<compile_context>
chip_gen: v5e
topology: v5e:2x2
jax: 0.10.0
libtpu: 0.0.40
codegen_flags: <defaults>
</compile_context>

<pallas_src>
import math
import functools

import jax
import jax.numpy as jnp
from jax.experimental import pallas as pl
from jax.experimental.pallas import tpu as pltpu


# ----------------------------- hardware helpers ----------------------------- #

def _sublane_multiple(dtype) -> int:
    # f32 tiles are (8, 128); 2-byte dtypes pack two rows per sublane -> (16, 128).
    return 16 if jnp.dtype(dtype).itemsize == 2 else 8


def _device_kind() -> str:
    try:
        return jax.devices()[0].device_kind.lower()
    except Exception:
        return ""


def _num_tensorcores() -> int:
    """TensorCores one Pallas kernel is sharded over via dimension_semantics."""
    kind = _device_kind()
    if "7" in kind:                       # v7x: 2 TensorCores per chip
        return 2
    if "v4" in kind or "v5p" in kind:     # megacore parts
        return 2
    return 1                              # v5e / v6e: single TensorCore


def _vmem_capacity_bytes() -> int:
    try:
        cap = getattr(pltpu.get_tpu_info(), "vmem_capacity_bytes", None)
        if cap:
            return int(cap)
    except Exception:
        pass
    # Fallback by generation: v7x has 64 MiB per TensorCore, earlier parts 128 MiB.
    return (64 if "7" in _device_kind() else 128) * 1024 * 1024


def _vmem_limit_bytes(capacity: int) -> int:
    # ~85% of physical VMEM; leaves headroom for compiler-internal scratch.
    return int(min(capacity * 0.85, capacity - 8 * 1024 * 1024))


def _choose_batch_tile(batch, hidden, act_dtype, w_dtype, vmem_budget, num_tc):
    """VMEM-aware, generation-aware batch tile.

    Picks the largest sublane-aligned divisor of `batch` whose double-buffered
    activation traffic (+ f32 epilogue temps) fits the VMEM budget after the
    single-buffered weight.  On 2-TC parts, prefers a grid-step count that is a
    multiple of the core count; on 1-TC parts a single full-batch step wins.
    """
    sl = _sublane_multiple(act_dtype)
    if batch % sl != 0:
        return batch                      # full-extent block is always legal
    act_bytes = jnp.dtype(act_dtype).itemsize
    w_bytes = jnp.dtype(w_dtype).itemsize
    weight_bytes = 10 * hidden * hidden * w_bytes        # (2H x 5H), single-buffered
    bias_bytes = 5 * hidden * 4
    # Per batch-row VMEM: 6 activation arrays (4 in + 2 out) double-buffered plus
    # ~2x f32 projection/temporaries in the epilogue.
    per_row = 12 * hidden * act_bytes + 40 * hidden
    avail = vmem_budget - weight_bytes - bias_bytes - (2 << 20)
    tb_cap = max(sl, avail // per_row)
    cands = [d for d in range(sl, batch + 1, sl) if batch % d == 0 and d <= tb_cap]
    if not cands:
        cands = [sl]
    if num_tc >= 2:
        balanced = [d for d in cands if (batch // d) % num_tc == 0]
        if balanced:
            return max(balanced)
    return max(cands)


def _sigmoid(x):
    # Exact sigmoid via tanh: keeps the transcendental on the EUP slot and avoids
    # a VALU divide in the gate epilogue.
    return 0.5 * jnp.tanh(0.5 * x) + 0.5


def _invariant_spec(shape, single_buffer):
    """BlockSpec for a grid-invariant operand (same block every grid step)."""
    n = len(shape)
    index_map = lambda *args, _n=n: (0,) * _n
    if single_buffer:
        return pl.BlockSpec(shape, index_map, pipeline_mode=pl.Buffered(1))
    return pl.BlockSpec(shape, index_map)


# ----------------------------- kernel --------------------------------------- #

def _tree_lstm_kernel(hl_ref, hr_ref, cl_ref, cr_ref, wl_ref, wr_ref, b_ref,
                      h_out_ref, c_out_ref, *, hidden_size, stacked):
    H = hidden_size
    mxu_dtype = wl_ref.dtype
    # Feed the MXU operands in a common dtype (native bf16 path if the user
    # prepared bf16 weights); accumulate in f32.
    hl = hl_ref[...].astype(mxu_dtype)
    hr = hr_ref[...].astype(mxu_dtype)

    if stacked:
        # Per-gate weight blocks: wl/wr are (5, H, H), bias is (5, 1, H).
        # Each gate's result starts at lane offset 0 -> no lane rotations.
        gates = []
        for k in range(5):
            pk = jnp.dot(hl, wl_ref[k], preferred_element_type=jnp.float32)
            pk = pk + jnp.dot(hr, wr_ref[k], preferred_element_type=jnp.float32)
            gates.append(pk + b_ref[k].astype(jnp.float32))
    else:
        # Fused lane-aligned layout: wl/wr are (H, 5H), bias is (1, 5H).
        proj = jnp.dot(hl, wl_ref[...], preferred_element_type=jnp.float32)
        proj = proj + jnp.dot(hr, wr_ref[...], preferred_element_type=jnp.float32)
        proj = proj + b_ref[...].astype(jnp.float32)
        gates = [proj[:, k * H:(k + 1) * H] for k in range(5)]

    i  = _sigmoid(gates[0])
    fl = _sigmoid(gates[1])
    fr = _sigmoid(gates[2])
    g  = jnp.tanh(gates[3])
    o  = _sigmoid(gates[4])

    cl = cl_ref[...].astype(jnp.float32)
    cr = cr_ref[...].astype(jnp.float32)
    c = fl * cl + fr * cr + i * g
    h = o * jnp.tanh(c)

    h_out_ref[...] = h.astype(h_out_ref.dtype)
    c_out_ref[...] = c.astype(c_out_ref.dtype)


# ----------------------------- wrappers -------------------------------------- #

def prepare_tree_lstm_weights(weight, bias, *, param_dtype=None):
    """One-time weight preparation (call ONCE per tree traversal, not per node).

    weight: (5H, 2H) nn.Linear.weight convention; bias: (5H,).
    Returns (w_l, w_r, b):
      H % 128 == 0 : w_l, w_r are (H, 5H) (K-split halves of W^T), b is (1, 5H).
      otherwise    : w_l, w_r are (5, H, H) per-gate blocks, b is (5, 1, H).
    Pass param_dtype=jnp.bfloat16 for the bf16 fast path (halves weight DMA and
    uses the native bf16 MXU path); bias always stays float32.
    """
    out_dim, in_dim = weight.shape
    H = in_dim // 2
    assert out_dim == 5 * H and in_dim == 2 * H, (weight.shape,)
    wt = weight.T                                   # (2H, 5H)
    if param_dtype is not None:
        wt = wt.astype(param_dtype)
    b = bias.astype(jnp.float32)

    if H % 128 == 0:
        w_l = wt[:H, :]                             # (H, 5H)
        w_r = wt[H:, :]                             # (H, 5H)
        b_p = b.reshape(1, 5 * H)
    else:
        # (2H, 5H) -> (2H, 5, H) -> (5, 2H, H); split K -> two (5, H, H) blocks.
        w3 = jnp.transpose(wt.reshape(2 * H, 5, H), (1, 0, 2))
        w_l = w3[:, :H, :]
        w_r = w3[:, H:, :]
        b_p = b.reshape(5, 1, H)
    return w_l, w_r, b_p


def tree_lstm_cell_prepared(hx_l, hx_r, params, *, batch_tile=None):
    """Hot path: forward of TreeLSTMCell (childsum=False) with prepared weights.

    hx_l, hx_r: ((B, H), (B, H)) tuples of (h, c).  params from
    prepare_tree_lstm_weights.  Returns (h, c), each (B, H) in the input dtype.
    """
    w_l, w_r, b_p = params
    prev_h_l, prev_c_l = hx_l
    prev_h_r, prev_c_r = hx_r
    B, H = prev_h_l.shape
    stacked = (w_l.ndim == 3)
    if stacked:
        assert w_l.shape == (5, H, H) and w_r.shape == (5, H, H), (w_l.shape,)
        assert b_p.shape == (5, 1, H), (b_p.shape,)
    else:
        assert w_l.shape == (H, 5 * H) and w_r.shape == (H, 5 * H), (w_l.shape,)
        assert b_p.shape == (1, 5 * H), (b_p.shape,)

    act_dtype = prev_h_l.dtype
    w_dtype = w_l.dtype
    sl = _sublane_multiple(act_dtype)

    num_tc = _num_tensorcores()
    vmem_cap = _vmem_capacity_bytes()
    vmem_limit = _vmem_limit_bytes(vmem_cap)

    if batch_tile is None:
        tb = _choose_batch_tile(B, H, act_dtype, w_dtype, vmem_limit, num_tc)
    else:
        tb = int(batch_tile)
        if B % tb != 0 or (tb != B and tb % sl != 0):
            raise ValueError(
                f"batch_tile={tb} must divide B={B} and be a multiple of {sl} "
                f"(or equal B) to satisfy the TPU block-shape rule.")
    grid = (B // tb,)

    act_spec = pl.BlockSpec((tb, H), lambda i: (i, 0))
    kernel = functools.partial(_tree_lstm_kernel, hidden_size=H, stacked=stacked)

    act_bytes = jnp.dtype(act_dtype).itemsize
    w_bytes = jnp.dtype(w_dtype).itemsize
    cost = pl.CostEstimate(
        flops=20 * B * H * H + 10 * B * H,
        transcendentals=6 * B * H,
        bytes_accessed=6 * B * H * act_bytes + 10 * H * H * w_bytes + 5 * H * 4,
    )

    def _call(single_buffer):
        w_spec = _invariant_spec(w_l.shape, single_buffer)
        b_spec = _invariant_spec(b_p.shape, single_buffer)
        return pl.pallas_call(
            kernel,
            out_shape=(jax.ShapeDtypeStruct((B, H), act_dtype),
                       jax.ShapeDtypeStruct((B, H), act_dtype)),
            grid_spec=pltpu.PrefetchScalarGridSpec(
                num_scalar_prefetch=0,
                grid=grid,
                in_specs=[act_spec, act_spec, act_spec, act_spec,
                          w_spec, w_spec, b_spec],
                out_specs=[act_spec, act_spec],
            ),
            compiler_params=pltpu.CompilerParams(
                dimension_semantics=("parallel",),
                vmem_limit_bytes=vmem_limit,
            ),
            cost_estimate=cost,
        )(prev_h_l, prev_h_r, prev_c_l, prev_c_r, w_l, w_r, b_p)

    try:
        h_out, c_out = _call(True)          # single-buffered invariant operands
    except Exception:
        h_out, c_out = _call(False)         # fallback: default double-buffering
    return h_out, c_out


def tree_lstm_cell(hx_l, hx_r, weight, bias, *, batch_tile=None, param_dtype=None):
    """Convenience wrapper taking raw (weight, bias). For recursive tree use,
    call prepare_tree_lstm_weights() once and use tree_lstm_cell_prepared()."""
    params = prepare_tree_lstm_weights(weight, bias, param_dtype=param_dtype)
    return tree_lstm_cell_prepared(hx_l, hx_r, params, batch_tile=batch_tile)


# ----------------------------- reference ------------------------------------- #

def tree_lstm_cell_ref(hx_l, hx_r, weight, bias):
    """Pure-JAX reference matching the PyTorch forward exactly."""
    prev_h_l, prev_c_l = hx_l
    prev_h_r, prev_c_r = hx_r
    children = jnp.concatenate([prev_h_l, prev_h_r], axis=1)
    proj = children @ weight.T + bias
    i, fl, fr, g, o = jnp.split(proj, 5, axis=-1)
    i, fl, fr, o = map(jax.nn.sigmoid, (i, fl, fr, o))
    g = jnp.tanh(g)
    c = fl * prev_c_l + fr * prev_c_r + i * g
    h = o * jnp.tanh(c)
    return h, c


# ----------------------------- test ------------------------------------------ #

if __name__ == "__main__":
    key = jax.random.PRNGKey(0)
    ok = True

    # H=32 exercises the stacked per-gate weight path (H % 128 != 0);
    # H=128 exercises the fused lane-aligned path.
    for H in (32, 128):
        k_w, k_b, k_act = jax.random.split(jax.random.fold_in(key, H), 3)
        stdv = 1.0 / math.sqrt(H)
        weight = jax.random.uniform(k_w, (5 * H, 2 * H), jnp.float32, -stdv, stdv)
        bias = jax.random.uniform(k_b, (5 * H,), jnp.float32, -stdv, stdv)
        params = prepare_tree_lstm_weights(weight, bias)

        for B in (8, 32):
            ks = jax.random.split(jax.random.fold_in(k_act, B), 4)
            prev_h_l = jax.random.normal(ks[0], (B, H), jnp.float32)
            prev_c_l = jax.random.normal(ks[1], (B, H), jnp.float32)
            prev_h_r = jax.random.normal(ks[2], (B, H), jnp.float32)
            prev_c_r = jax.random.normal(ks[3], (B, H), jnp.float32)

            h, c = tree_lstm_cell_prepared((prev_h_l, prev_c_l),
                                           (prev_h_r, prev_c_r), params)
            jax.block_until_ready((h, c))

            h_ref, c_ref = tree_lstm_cell_ref((prev_h_l, prev_c_l),
                                              (prev_h_r, prev_c_r), weight, bias)
            ok &= bool(jnp.allclose(h, h_ref, atol=1e-4, rtol=1e-4))
            ok &= bool(jnp.allclose(c, c_ref, atol=1e-4, rtol=1e-4))

    # bf16 fast path (bf16 weights + bf16 activations) vs f32 reference, loose tol.
    H, B = 32, 32
    k_w, k_b, k_act = jax.random.split(jax.random.fold_in(key, 999), 3)
    stdv = 1.0 / math.sqrt(H)
    weight = jax.random.uniform(k_w, (5 * H, 2 * H), jnp.float32, -stdv, stdv)
    bias = jax.random.uniform(k_b, (5 * H,), jnp.float32, -stdv, stdv)
    params_bf16 = prepare_tree_lstm_weights(weight, bias, param_dtype=jnp.bfloat16)
    ks = jax.random.split(k_act, 4)
    acts = [jax.random.normal(k, (B, H), jnp.float32) for k in ks]
    h16, c16 = tree_lstm_cell_prepared(
        (acts[0].astype(jnp.bfloat16), acts[1].astype(jnp.bfloat16)),
        (acts[2].astype(jnp.bfloat16), acts[3].astype(jnp.bfloat16)),
        params_bf16)
    jax.block_until_ready((h16, c16))
    h_ref, c_ref = tree_lstm_cell_ref((acts[0], acts[1]), (acts[2], acts[3]),
                                      weight, bias)
    ok &= bool(jnp.allclose(h16.astype(jnp.float32), h_ref, atol=5e-2, rtol=5e-2))
    ok &= bool(jnp.allclose(c16.astype(jnp.float32), c_ref, atol=5e-2, rtol=5e-2))

    assert ok, "Pallas TreeLSTMCell does not match reference"
    print("KERNEL_OK")
</pallas_src>

<mosaic_0001>
module attributes {stable_mosaic.version = 11 : i64} {
  func.func @_tree_lstm_kernel(%arg0: i32, %arg1: memref<8x32xf32, #tpu.memory_space<vmem>>, %arg2: memref<8x32xf32, #tpu.memory_space<vmem>>, %arg3: memref<8x32xf32, #tpu.memory_space<vmem>>, %arg4: memref<8x32xf32, #tpu.memory_space<vmem>>, %arg5: memref<5x32x32xf32, #tpu.memory_space<vmem>>, %arg6: memref<5x32x32xf32, #tpu.memory_space<vmem>>, %arg7: memref<5x1x32xf32, #tpu.memory_space<vmem>>, %arg8: memref<8x32xf32, #tpu.memory_space<vmem>>, %arg9: memref<8x32xf32, #tpu.memory_space<vmem>>) attributes {dimension_semantics = [#tpu.dimension_semantics<parallel>], iteration_bounds = array<i64: 1>, scalar_prefetch = 0 : i64, scratch_operands = 0 : i64, tpu.core_type = #tpu.core_type<tc>, window_params = [{transform_indices = @transform_0, window_bounds = array<i64: 8, 32>}, {transform_indices = @transform_1, window_bounds = array<i64: 8, 32>}, {transform_indices = @transform_2, window_bounds = array<i64: 8, 32>}, {transform_indices = @transform_3, window_bounds = array<i64: 8, 32>}, {pipeline_mode = #tpu.pipeline_mode<synchronous>, transform_indices = @transform_4, window_bounds = array<i64: 5, 32, 32>}, {pipeline_mode = #tpu.pipeline_mode<synchronous>, transform_indices = @transform_5, window_bounds = array<i64: 5, 32, 32>}, {pipeline_mode = #tpu.pipeline_mode<synchronous>, transform_indices = @transform_6, window_bounds = array<i64: 5, 1, 32>}, {transform_indices = @transform_7, window_bounds = array<i64: 8, 32>}, {transform_indices = @transform_8, window_bounds = array<i64: 8, 32>}]} {
    %c0 = arith.constant 0 : index
    %c0_0 = arith.constant 0 : index
    %0 = vector.load %arg1[%c0, %c0_0] : memref<8x32xf32, #tpu.memory_space<vmem>>, vector<8x32xf32>
    %c0_1 = arith.constant 0 : index
    %c0_2 = arith.constant 0 : index
    %1 = vector.load %arg2[%c0_1, %c0_2] : memref<8x32xf32, #tpu.memory_space<vmem>>, vector<8x32xf32>
    %c0_3 = arith.constant 0 : index
    %c0_4 = arith.constant 0 : index
    %c0_5 = arith.constant 0 : index
    %2 = vector.load %arg5[%c0_3, %c0_4, %c0_5] : memref<5x32x32xf32, #tpu.memory_space<vmem>>, vector<1x32x32xf32>
    %3 = vector.shape_cast %2 : vector<1x32x32xf32> to vector<32x32xf32>
    %cst = arith.constant dense<0.000000e+00> : vector<8x32xf32>
    %4 = tpu.matmul %0, %3, %cst {dimension_numbers = #tpu.dot_dimension_numbers<[1], [0], [0], [1], [0, 0, 1, 1], [], []>} : vector<8x32xf32>, vector<32x32xf32>, vector<8x32xf32> -> vector<8x32xf32>
    %c0_6 = arith.constant 0 : index
    %c0_7 = arith.constant 0 : index
    %c0_8 = arith.constant 0 : index
    %5 = vector.load %arg6[%c0_6, %c0_7, %c0_8] : memref<5x32x32xf32, #tpu.memory_space<vmem>>, vector<1x32x32xf32>
    %6 = vector.shape_cast %5 : vector<1x32x32xf32> to vector<32x32xf32>
    %cst_9 = arith.constant dense<0.000000e+00> : vector<8x32xf32>
    %7 = tpu.matmul %1, %6, %cst_9 {dimension_numbers = #tpu.dot_dimension_numbers<[1], [0], [0], [1], [0, 0, 1, 1], [], []>} : vector<8x32xf32>, vector<32x32xf32>, vector<8x32xf32> -> vector<8x32xf32>
    %8 = arith.addf %4, %7 : vector<8x32xf32>
    %c0_10 = arith.constant 0 : index
    %c0_11 = arith.constant 0 : index
    %c0_12 = arith.constant 0 : index
    %9 = vector.load %arg7[%c0_10, %c0_11, %c0_12] : memref<5x1x32xf32, #tpu.memory_space<vmem>>, vector<1x1x32xf32>
    %10 = vector.shape_cast %9 : vector<1x1x32xf32> to vector<1x32xf32>
    %11 = vector.broadcast %10 : vector<1x32xf32> to vector<8x32xf32>
    %12 = arith.addf %8, %11 : vector<8x32xf32>
    %c1 = arith.constant 1 : index
    %c0_13 = arith.constant 0 : index
    %c0_14 = arith.constant 0 : index
    %13 = vector.load %arg5[%c1, %c0_13, %c0_14] : memref<5x32x32xf32, #tpu.memory_space<vmem>>, vector<1x32x32xf32>
    %14 = vector.shape_cast %13 : vector<1x32x32xf32> to vector<32x32xf32>
    %cst_15 = arith.constant dense<0.000000e+00> : vector<8x32xf32>
    %15 = tpu.matmul %0, %14, %cst_15 {dimension_numbers = #tpu.dot_dimension_numbers<[1], [0], [0], [1], [0, 0, 1, 1], [], []>} : vector<8x32xf32>, vector<32x32xf32>, vector<8x32xf32> -> vector<8x32xf32>
    %c1_16 = arith.constant 1 : index
    %c0_17 = arith.constant 0 : index
    %c0_18 = arith.constant 0 : index
    %16 = vector.load %arg6[%c1_16, %c0_17, %c0_18] : memref<5x32x32xf32, #tpu.memory_space<vmem>>, vector<1x32x32xf32>
    %17 = vector.shape_cast %16 : vector<1x32x32xf32> to vector<32x32xf32>
    %cst_19 = arith.constant dense<0.000000e+00> : vector<8x32xf32>
    %18 = tpu.matmul %1, %17, %cst_19 {dimension_numbers = #tpu.dot_dimension_numbers<[1], [0], [0], [1], [0, 0, 1, 1], [], []>} : vector<8x32xf32>, vector<32x32xf32>, vector<8x32xf32> -> vector<8x32xf32>
    %19 = arith.addf %15, %18 : vector<8x32xf32>
    %c1_20 = arith.constant 1 : index
    %c0_21 = arith.constant 0 : index
    %c0_22 = arith.constant 0 : index
    %20 = vector.load %arg7[%c1_20, %c0_21, %c0_22] : memref<5x1x32xf32, #tpu.memory_space<vmem>>, vector<1x1x32xf32>
    %21 = vector.shape_cast %20 : vector<1x1x32xf32> to vector<1x32xf32>
    %22 = vector.broadcast %21 : vector<1x32xf32> to vector<8x32xf32>
    %23 = arith.addf %19, %22 : vector<8x32xf32>
    %c2 = arith.constant 2 : index
    %c0_23 = arith.constant 0 : index
    %c0_24 = arith.constant 0 : index
    %24 = vector.load %arg5[%c2, %c0_23, %c0_24] : memref<5x32x32xf32, #tpu.memory_space<vmem>>, vector<1x32x32xf32>
    %25 = vector.shape_cast %24 : vector<1x32x32xf32> to vector<32x32xf32>
    %cst_25 = arith.constant dense<0.000000e+00> : vector<8x32xf32>
    %26 = tpu.matmul %0, %25, %cst_25 {dimension_numbers = #tpu.dot_dimension_numbers<[1], [0], [0], [1], [0, 0, 1, 1], [], []>} : vector<8x32xf32>, vector<32x32xf32>, vector<8x32xf32> -> vector<8x32xf32>
    %c2_26 = arith.constant 2 : index
    %c0_27 = arith.constant 0 : index
    %c0_28 = arith.constant 0 : index
    %27 = vector.load %arg6[%c2_26, %c0_27, %c0_28] : memref<5x32x32xf32, #tpu.memory_space<vmem>>, vector<1x32x32xf32>
    %28 = vector.shape_cast %27 : vector<1x32x32xf32> to vector<32x32xf32>
    %cst_29 = arith.constant dense<0.000000e+00> : vector<8x32xf32>
    %29 = tpu.matmul %1, %28, %cst_29 {dimension_numbers = #tpu.dot_dimension_numbers<[1], [0], [0], [1], [0, 0, 1, 1], [], []>} : vector<8x32xf32>, vector<32x32xf32>, vector<8x32xf32> -> vector<8x32xf32>
    %30 = arith.addf %26, %29 : vector<8x32xf32>
    %c2_30 = arith.constant 2 : index
    %c0_31 = arith.constant 0 : index
    %c0_32 = arith.constant 0 : index
    %31 = vector.load %arg7[%c2_30, %c0_31, %c0_32] : memref<5x1x32xf32, #tpu.memory_space<vmem>>, vector<1x1x32xf32>
    %32 = vector.shape_cast %31 : vector<1x1x32xf32> to vector<1x32xf32>
    %33 = vector.broadcast %32 : vector<1x32xf32> to vector<8x32xf32>
    %34 = arith.addf %30, %33 : vector<8x32xf32>
    %c3 = arith.constant 3 : index
    %c0_33 = arith.constant 0 : index
    %c0_34 = arith.constant 0 : index
    %35 = vector.load %arg5[%c3, %c0_33, %c0_34] : memref<5x32x32xf32, #tpu.memory_space<vmem>>, vector<1x32x32xf32>
    %36 = vector.shape_cast %35 : vector<1x32x32xf32> to vector<32x32xf32>
    %cst_35 = arith.constant dense<0.000000e+00> : vector<8x32xf32>
    %37 = tpu.matmul %0, %36, %cst_35 {dimension_numbers = #tpu.dot_dimension_numbers<[1], [0], [0], [1], [0, 0, 1, 1], [], []>} : vector<8x32xf32>, vector<32x32xf32>, vector<8x32xf32> -> vector<8x32xf32>
    %c3_36 = arith.constant 3 : index
    %c0_37 = arith.constant 0 : index
    %c0_38 = arith.constant 0 : index
    %38 = vector.load %arg6[%c3_36, %c0_37, %c0_38] : memref<5x32x32xf32, #tpu.memory_space<vmem>>, vector<1x32x32xf32>
    %39 = vector.shape_cast %38 : vector<1x32x32xf32> to vector<32x32xf32>
    %cst_39 = arith.constant dense<0.000000e+00> : vector<8x32xf32>
    %40 = tpu.matmul %1, %39, %cst_39 {dimension_numbers = #tpu.dot_dimension_numbers<[1], [0], [0], [1], [0, 0, 1, 1], [], []>} : vector<8x32xf32>, vector<32x32xf32>, vector<8x32xf32> -> vector<8x32xf32>
    %41 = arith.addf %37, %40 : vector<8x32xf32>
    %c3_40 = arith.constant 3 : index
    %c0_41 = arith.constant 0 : index
    %c0_42 = arith.constant 0 : index
    %42 = vector.load %arg7[%c3_40, %c0_41, %c0_42] : memref<5x1x32xf32, #tpu.memory_space<vmem>>, vector<1x1x32xf32>
    %43 = vector.shape_cast %42 : vector<1x1x32xf32> to vector<1x32xf32>
    %44 = vector.broadcast %43 : vector<1x32xf32> to vector<8x32xf32>
    %45 = arith.addf %41, %44 : vector<8x32xf32>
    %c4 = arith.constant 4 : index
    %c0_43 = arith.constant 0 : index
    %c0_44 = arith.constant 0 : index
    %46 = vector.load %arg5[%c4, %c0_43, %c0_44] : memref<5x32x32xf32, #tpu.memory_space<vmem>>, vector<1x32x32xf32>
    %47 = vector.shape_cast %46 : vector<1x32x32xf32> to vector<32x32xf32>
    %cst_45 = arith.constant dense<0.000000e+00> : vector<8x32xf32>
    %48 = tpu.matmul %0, %47, %cst_45 {dimension_numbers = #tpu.dot_dimension_numbers<[1], [0], [0], [1], [0, 0, 1, 1], [], []>} : vector<8x32xf32>, vector<32x32xf32>, vector<8x32xf32> -> vector<8x32xf32>
    %c4_46 = arith.constant 4 : index
    %c0_47 = arith.constant 0 : index
    %c0_48 = arith.constant 0 : index
    %49 = vector.load %arg6[%c4_46, %c0_47, %c0_48] : memref<5x32x32xf32, #tpu.memory_space<vmem>>, vector<1x32x32xf32>
    %50 = vector.shape_cast %49 : vector<1x32x32xf32> to vector<32x32xf32>
    %cst_49 = arith.constant dense<0.000000e+00> : vector<8x32xf32>
    %51 = tpu.matmul %1, %50, %cst_49 {dimension_numbers = #tpu.dot_dimension_numbers<[1], [0], [0], [1], [0, 0, 1, 1], [], []>} : vector<8x32xf32>, vector<32x32xf32>, vector<8x32xf32> -> vector<8x32xf32>
    %52 = arith.addf %48, %51 : vector<8x32xf32>
    %c4_50 = arith.constant 4 : index
    %c0_51 = arith.constant 0 : index
    %c0_52 = arith.constant 0 : index
    %53 = vector.load %arg7[%c4_50, %c0_51, %c0_52] : memref<5x1x32xf32, #tpu.memory_space<vmem>>, vector<1x1x32xf32>
    %54 = vector.shape_cast %53 : vector<1x1x32xf32> to vector<1x32xf32>
    %55 = vector.broadcast %54 : vector<1x32xf32> to vector<8x32xf32>
    %56 = arith.addf %52, %55 : vector<8x32xf32>
    %cst_53 = arith.constant 5.000000e-01 : f32
    %57 = vector.broadcast %cst_53 : f32 to vector<8x32xf32>
    %58 = arith.mulf %57, %12 : vector<8x32xf32>
    %59 = math.tanh %58 : vector<8x32xf32>
    %cst_54 = arith.constant 5.000000e-01 : f32
    %60 = vector.broadcast %cst_54 : f32 to vector<8x32xf32>
    %61 = arith.mulf %60, %59 : vector<8x32xf32>
    %cst_55 = arith.constant 5.000000e-01 : f32
    %62 = vector.broadcast %cst_55 : f32 to vector<8x32xf32>
    %63 = arith.addf %61, %62 : vector<8x32xf32>
    %cst_56 = arith.constant 5.000000e-01 : f32
    %64 = vector.broadcast %cst_56 : f32 to vector<8x32xf32>
    %65 = arith.mulf %64, %23 : vector<8x32xf32>
    %66 = math.tanh %65 : vector<8x32xf32>
    %cst_57 = arith.constant 5.000000e-01 : f32
    %67 = vector.broadcast %cst_57 : f32 to vector<8x32xf32>
    %68 = arith.mulf %67, %66 : vector<8x32xf32>
    %cst_58 = arith.constant 5.000000e-01 : f32
    %69 = vector.broadcast %cst_58 : f32 to vector<8x32xf32>
    %70 = arith.addf %68, %69 : vector<8x32xf32>
    %cst_59 = arith.constant 5.000000e-01 : f32
    %71 = vector.broadcast %cst_59 : f32 to vector<8x32xf32>
    %72 = arith.mulf %71, %34 : vector<8x32xf32>
    %73 = math.tanh %72 : vector<8x32xf32>
    %cst_60 = arith.constant 5.000000e-01 : f32
    %74 = vector.broadcast %cst_60 : f32 to vector<8x32xf32>
    %75 = arith.mulf %74, %73 : vector<8x32xf32>
    %cst_61 = arith.constant 5.000000e-01 : f32
    %76 = vector.broadcast %cst_61 : f32 to vector<8x32xf32>
    %77 = arith.addf %75, %76 : vector<8x32xf32>
    %78 = math.tanh %45 : vector<8x32xf32>
    %cst_62 = arith.constant 5.000000e-01 : f32
    %79 = vector.broadcast %cst_62 : f32 to vector<8x32xf32>
    %80 = arith.mulf %79, %56 : vector<8x32xf32>
    %81 = math.tanh %80 : vector<8x32xf32>
    %cst_63 = arith.constant 5.000000e-01 : f32
    %82 = vector.broadcast %cst_63 : f32 to vector<8x32xf32>
    %83 = arith.mulf %82, %81 : vector<8x32xf32>
    %cst_64 = arith.constant 5.000000e-01 : f32
    %84 = vector.broadcast %cst_64 : f32 to vector<8x32xf32>
    %85 = arith.addf %83, %84 : vector<8x32xf32>
    %c0_65 = arith.constant 0 : index
    %c0_66 = arith.constant 0 : index
    %86 = vector.load %arg3[%c0_65, %c0_66] : memref<8x32xf32, #tpu.memory_space<vmem>>, vector<8x32xf32>
    %c0_67 = arith.constant 0 : index
    %c0_68 = arith.constant 0 : index
    %87 = vector.load %arg4[%c0_67, %c0_68] : memref<8x32xf32, #tpu.memory_space<vmem>>, vector<8x32xf32>
    %88 = arith.mulf %70, %86 : vector<8x32xf32>
    %89 = arith.mulf %77, %87 : vector<8x32xf32>
    %90 = arith.addf %88, %89 : vector<8x32xf32>
    %91 = arith.mulf %63, %78 : vector<8x32xf32>
    %92 = arith.addf %90, %91 : vector<8x32xf32>
    %93 = math.tanh %92 : vector<8x32xf32>
    %94 = arith.mulf %85, %93 : vector<8x32xf32>
    %c0_69 = arith.constant 0 : index
    %c0_70 = arith.constant 0 : index
    %95 = vector.load %arg8[%c0_69, %c0_70] : memref<8x32xf32, #tpu.memory_space<vmem>>, vector<8x32xf32>
    tpu.vector_store %arg8[%c0_69, %c0_70], %94 {strides = array<i32>} : memref<8x32xf32, #tpu.memory_space<vmem>>, vector<8x32xf32>,
    %c0_71 = arith.constant 0 : index
    %c0_72 = arith.constant 0 : index
    %96 = vector.load %arg9[%c0_71, %c0_72] : memref<8x32xf32, #tpu.memory_space<vmem>>, vector<8x32xf32>
    tpu.vector_store %arg9[%c0_71, %c0_72], %92 {strides = array<i32>} : memref<8x32xf32, #tpu.memory_space<vmem>>, vector<8x32xf32>,
    return
  }
  func.func @transform_0(%arg0: i32) -> (i32, i32) {
    %c0_i32 = arith.constant 0 : i32
    %c0_i32_0 = arith.constant 0 : i32
    return %arg0, %c0_i32 : i32, i32
  }
  func.func @transform_1(%arg0: i32) -> (i32, i32) {
    %c0_i32 = arith.constant 0 : i32
    %c0_i32_0 = arith.constant 0 : i32
    return %arg0, %c0_i32 : i32, i32
  }
  func.func @transform_2(%arg0: i32) -> (i32, i32) {
    %c0_i32 = arith.constant 0 : i32
    %c0_i32_0 = arith.constant 0 : i32
    return %arg0, %c0_i32 : i32, i32
  }
  func.func @transform_3(%arg0: i32) -> (i32, i32) {
    %c0_i32 = arith.constant 0 : i32
    %c0_i32_0 = arith.constant 0 : i32
    return %arg0, %c0_i32 : i32, i32
  }
  func.func @transform_4(%arg0: i32) -> (i32, i32, i32) {
    %c0_i32 = arith.constant 0 : i32
    %c0_i32_0 = arith.constant 0 : i32
    %c0_i32_1 = arith.constant 0 : i32
    %c0_i32_2 = arith.constant 0 : i32
    return %c0_i32, %c0_i32_0, %c0_i32_1 : i32, i32, i32
  }
  func.func @transform_5(%arg0: i32) -> (i32, i32, i32) {
    %c0_i32 = arith.constant 0 : i32
    %c0_i32_0 = arith.constant 0 : i32
    %c0_i32_1 = arith.constant 0 : i32
    %c0_i32_2 = arith.constant 0 : i32
    return %c0_i32, %c0_i32_0, %c0_i32_1 : i32, i32, i32
  }
  func.func @transform_6(%arg0: i32) -> (i32, i32, i32) {
    %c0_i32 = arith.constant 0 : i32
    %c0_i32_0 = arith.constant 0 : i32
    %c0_i32_1 = arith.constant 0 : i32
    %c0_i32_2 = arith.constant 0 : i32
    return %c0_i32, %c0_i32_0, %c0_i32_1 : i32, i32, i32
  }
  func.func @transform_7(%arg0: i32) -> (i32, i32) {
    %c0_i32 = arith.constant 0 : i32
    %c0_i32_0 = arith.constant 0 : i32
    return %arg0, %c0_i32 : i32, i32
  }
  func.func @transform_8(%arg0: i32) -> (i32, i32) {
    %c0_i32 = arith.constant 0 : i32
    %c0_i32_0 = arith.constant 0 : i32
    return %arg0, %c0_i32 : i32, i32
  }
}

module attributes {stable_mosaic.version = 11 : i64} {
  func.func @_tree_lstm_kernel(%arg0: i32, %arg1: memref<8x32xf32, #tpu.memory_space<vmem>>, %arg2: memref<8x32xf32, #tpu.memory_space<vmem>>, %arg3: memref<8x32xf32, #tpu.memory_space<vmem>>, %arg4: memref<8x32xf32, #tpu.memory_space<vmem>>, %arg5: memref<5x32x32xf32, #tpu.memory_space<vmem>>, %arg6: memref<5x32x32xf32, #tpu.memory_space<vmem>>, %arg7: memref<5x1x32xf32, #tpu.memory_space<vmem>>, %arg8: memref<8x32xf32, #tpu.memory_space<vmem>>, %arg9: memref<8x32xf32, #tpu.memory_space<vmem>>) attributes {dimension_semantics = [#tpu.dimension_semantics<parallel>], iteration_bounds = array<i64: 1>, scalar_prefetch = 0 : i64, scratch_operands = 0 : i64, tpu.core_type = #tpu.core_type<tc>, window_params = [{transform_indices = @transform_0, window_bounds = array<i64: 8, 32>}, {transform_indices = @transform_1, window_bounds = array<i64: 8, 32>}, {transform_indices = @transform_2, window_bounds = array<i64: 8, 32>}, {transform_indices = @transform_3, window_bounds = array<i64: 8, 32>}, {pipeline_mode = #tpu.pipeline_mode<synchronous>, transform_indices = @transform_4, window_bounds = array<i64: 5, 32, 32>}, {pipeline_mode = #tpu.pipeline_mode<synchronous>, transform_indices = @transform_5, window_bounds = array<i64: 5, 32, 32>}, {pipeline_mode = #tpu.pipeline_mode<synchronous>, transform_indices = @transform_6, window_bounds = array<i64: 5, 1, 32>}, {transform_indices = @transform_7, window_bounds = array<i64: 8, 32>}, {transform_indices = @transform_8, window_bounds = array<i64: 8, 32>}]} {
    %c0 = arith.constant 0 : index
    %c0_0 = arith.constant 0 : index
    %0 = vector.load %arg1[%c0, %c0_0] : memref<8x32xf32, #tpu.memory_space<vmem>>, vector<8x32xf32>
    %c0_1 = arith.constant 0 : index
    %c0_2 = arith.constant 0 : index
    %1 = vector.load %arg2[%c0_1, %c0_2] : memref<8x32xf32, #tpu.memory_space<vmem>>, vector<8x32xf32>
    %c0_3 = arith.constant 0 : index
    %c0_4 = arith.constant 0 : index
    %c0_5 = arith.constant 0 : index
    %2 = vector.load %arg5[%c0_3, %c0_4, %c0_5] : memref<5x32x32xf32, #tpu.memory_space<vmem>>, vector<1x32x32xf32>
    %3 = vector.shape_cast %2 : vector<1x32x32xf32> to vector<32x32xf32>
    %cst = arith.constant dense<0.000000e+00> : vector<8x32xf32>
    %4 = tpu.matmul %0, %3, %cst {dimension_numbers = #tpu.dot_dimension_numbers<[1], [0], [0], [1], [0, 0, 1, 1], [], []>} : vector<8x32xf32>, vector<32x32xf32>, vector<8x32xf32> -> vector<8x32xf32>
    %c0_6 = arith.constant 0 : index
    %c0_7 = arith.constant 0 : index
    %c0_8 = arith.constant 0 : index
    %5 = vector.load %arg6[%c0_6, %c0_7, %c0_8] : memref<5x32x32xf32, #tpu.memory_space<vmem>>, vector<1x32x32xf32>
    %6 = vector.shape_cast %5 : vector<1x32x32xf32> to vector<32x32xf32>
    %cst_9 = arith.constant dense<0.000000e+00> : vector<8x32xf32>
    %7 = tpu.matmul %1, %6, %cst_9 {dimension_numbers = #tpu.dot_dimension_numbers<[1], [0], [0], [1], [0, 0, 1, 1], [], []>} : vector<8x32xf32>, vector<32x32xf32>, vector<8x32xf32> -> vector<8x32xf32>
    %8 = arith.addf %4, %7 : vector<8x32xf32>
    %c0_10 = arith.constant 0 : index
    %c0_11 = arith.constant 0 : index
    %c0_12 = arith.constant 0 : index
    %9 = vector.load %arg7[%c0_10, %c0_11, %c0_12] : memref<5x1x32xf32, #tpu.memory_space<vmem>>, vector<1x1x32xf32>
    %10 = vector.shape_cast %9 : vector<1x1x32xf32> to vector<1x32xf32>
    %11 = vector.broadcast %10 : vector<1x32xf32> to vector<8x32xf32>
    %12 = arith.addf %8, %11 : vector<8x32xf32>
    %c1 = arith.constant 1 : index
    %c0_13 = arith.constant 0 : index
    %c0_14 = arith.constant 0 : index
    %13 = vector.load %arg5[%c1, %c0_13, %c0_14] : memref<5x32x32xf32, #tpu.memory_space<vmem>>, vector<1x32x32xf32>
    %14 = vector.shape_cast %13 : vector<1x32x32xf32> to vector<32x32xf32>
    %cst_15 = arith.constant dense<0.000000e+00> : vector<8x32xf32>
    %15 = tpu.matmul %0, %14, %cst_15 {dimension_numbers = #tpu.dot_dimension_numbers<[1], [0], [0], [1], [0, 0, 1, 1], [], []>} : vector<8x32xf32>, vector<32x32xf32>, vector<8x32xf32> -> vector<8x32xf32>
    %c1_16 = arith.constant 1 : index
    %c0_17 = arith.constant 0 : index
    %c0_18 = arith.constant 0 : index
    %16 = vector.load %arg6[%c1_16, %c0_17, %c0_18] : memref<5x32x32xf32, #tpu.memory_space<vmem>>, vector<1x32x32xf32>
    %17 = vector.shape_cast %16 : vector<1x32x32xf32> to vector<32x32xf32>
    %cst_19 = arith.constant dense<0.000000e+00> : vector<8x32xf32>
    %18 = tpu.matmul %1, %17, %cst_19 {dimension_numbers = #tpu.dot_dimension_numbers<[1], [0], [0], [1], [0, 0, 1, 1], [], []>} : vector<8x32xf32>, vector<32x32xf32>, vector<8x32xf32> -> vector<8x32xf32>
    %19 = arith.addf %15, %18 : vector<8x32xf32>
    %c1_20 = arith.constant 1 : index
    %c0_21 = arith.constant 0 : index
    %c0_22 = arith.constant 0 : index
    %20 = vector.load %arg7[%c1_20, %c0_21, %c0_22] : memref<5x1x32xf32, #tpu.memory_space<vmem>>, vector<1x1x32xf32>
    %21 = vector.shape_cast %20 : vector<1x1x32xf32> to vector<1x32xf32>
    %22 = vector.broadcast %21 : vector<1x32xf32> to vector<8x32xf32>
    %23 = arith.addf %19, %22 : vector<8x32xf32>
    %c2 = arith.constant 2 : index
    %c0_23 = arith.constant 0 : index
    %c0_24 = arith.constant 0 : index
    %24 = vector.load %arg5[%c2, %c0_23, %c0_24] : memref<5x32x32xf32, #tpu.memory_space<vmem>>, vector<1x32x32xf32>
    %25 = vector.shape_cast %24 : vector<1x32x32xf32> to vector<32x32xf32>
    %cst_25 = arith.constant dense<0.000000e+00> : vector<8x32xf32>
    %26 = tpu.matmul %0, %25, %cst_25 {dimension_numbers = #tpu.dot_dimension_numbers<[1], [0], [0], [1], [0, 0, 1, 1], [], []>} : vector<8x32xf32>, vector<32x32xf32>, vector<8x32xf32> -> vector<8x32xf32>
    %c2_26 = arith.constant 2 : index
    %c0_27 = arith.constant 0 : index
    %c0_28 = arith.constant 0 : index
    %27 = vector.load %arg6[%c2_26, %c0_27, %c0_28] : memref<5x32x32xf32, #tpu.memory_space<vmem>>, vector<1x32x32xf32>
    %28 = vector.shape_cast %27 : vector<1x32x32xf32> to vector<32x32xf32>
    %cst_29 = arith.constant dense<0.000000e+00> : vector<8x32xf32>
    %29 = tpu.matmul %1, %28, %cst_29 {dimension_numbers = #tpu.dot_dimension_numbers<[1], [0], [0], [1], [0, 0, 1, 1], [], []>} : vector<8x32xf32>, vector<32x32xf32>, vector<8x32xf32> -> vector<8x32xf32>
    %30 = arith.addf %26, %29 : vector<8x32xf32>
    %c2_30 = arith.constant 2 : index
    %c0_31 = arith.constant 0 : index
    %c0_32 = arith.constant 0 : index
    %31 = vector.load %arg7[%c2_30, %c0_31, %c0_32] : memref<5x1x32xf32, #tpu.memory_space<vmem>>, vector<1x1x32xf32>
    %32 = vector.shape_cast %31 : vector<1x1x32xf32> to vector<1x32xf32>
    %33 = vector.broadcast %32 : vector<1x32xf32> to vector<8x32xf32>
    %34 = arith.addf %30, %33 : vector<8x32xf32>
    %c3 = arith.constant 3 : index
    %c0_33 = arith.constant 0 : index
    %c0_34 = arith.constant 0 : index
    %35 = vector.load %arg5[%c3, %c0_33, %c0_34] : memref<5x32x32xf32, #tpu.memory_space<vmem>>, vector<1x32x32xf32>
    %36 = vector.shape_cast %35 : vector<1x32x32xf32> to vector<32x32xf32>
    %cst_35 = arith.constant dense<0.000000e+00> : vector<8x32xf32>
    %37 = tpu.matmul %0, %36, %cst_35 {dimension_numbers = #tpu.dot_dimension_numbers<[1], [0], [0], [1], [0, 0, 1, 1], [], []>} : vector<8x32xf32>, vector<32x32xf32>, vector<8x32xf32> -> vector<8x32xf32>
    %c3_36 = arith.constant 3 : index
    %c0_37 = arith.constant 0 : index
    %c0_38 = arith.constant 0 : index
    %38 = vector.load %arg6[%c3_36, %c0_37, %c0_38] : memref<5x32x32xf32, #tpu.memory_space<vmem>>, vector<1x32x32xf32>
    %39 = vector.shape_cast %38 : vector<1x32x32xf32> to vector<32x32xf32>
    %cst_39 = arith.constant dense<0.000000e+00> : vector<8x32xf32>
    %40 = tpu.matmul %1, %39, %cst_39 {dimension_numbers = #tpu.dot_dimension_numbers<[1], [0], [0], [1], [0, 0, 1, 1], [], []>} : vector<8x32xf32>, vector<32x32xf32>, vector<8x32xf32> -> vector<8x32xf32>
    %41 = arith.addf %37, %40 : vector<8x32xf32>
    %c3_40 = arith.constant 3 : index
    %c0_41 = arith.constant 0 : index
    %c0_42 = arith.constant 0 : index
    %42 = vector.load %arg7[%c3_40, %c0_41, %c0_42] : memref<5x1x32xf32, #tpu.memory_space<vmem>>, vector<1x1x32xf32>
    %43 = vector.shape_cast %42 : vector<1x1x32xf32> to vector<1x32xf32>
    %44 = vector.broadcast %43 : vector<1x32xf32> to vector<8x32xf32>
    %45 = arith.addf %41, %44 : vector<8x32xf32>
    %c4 = arith.constant 4 : index
    %c0_43 = arith.constant 0 : index
    %c0_44 = arith.constant 0 : index
    %46 = vector.load %arg5[%c4, %c0_43, %c0_44] : memref<5x32x32xf32, #tpu.memory_space<vmem>>, vector<1x32x32xf32>
    %47 = vector.shape_cast %46 : vector<1x32x32xf32> to vector<32x32xf32>
    %cst_45 = arith.constant dense<0.000000e+00> : vector<8x32xf32>
    %48 = tpu.matmul %0, %47, %cst_45 {dimension_numbers = #tpu.dot_dimension_numbers<[1], [0], [0], [1], [0, 0, 1, 1], [], []>} : vector<8x32xf32>, vector<32x32xf32>, vector<8x32xf32> -> vector<8x32xf32>
    %c4_46 = arith.constant 4 : index
    %c0_47 = arith.constant 0 : index
    %c0_48 = arith.constant 0 : index
    %49 = vector.load %arg6[%c4_46, %c0_47, %c0_48] : memref<5x32x32xf32, #tpu.memory_space<vmem>>, vector<1x32x32xf32>
    %50 = vector.shape_cast %49 : vector<1x32x32xf32> to vector<32x32xf32>
    %cst_49 = arith.constant dense<0.000000e+00> : vector<8x32xf32>
    %51 = tpu.matmul %1, %50, %cst_49 {dimension_numbers = #tpu.dot_dimension_numbers<[1], [0], [0], [1], [0, 0, 1, 1], [], []>} : vector<8x32xf32>, vector<32x32xf32>, vector<8x32xf32> -> vector<8x32xf32>
    %52 = arith.addf %48, %51 : vector<8x32xf32>
    %c4_50 = arith.constant 4 : index
    %c0_51 = arith.constant 0 : index
    %c0_52 = arith.constant 0 : index
    %53 = vector.load %arg7[%c4_50, %c0_51, %c0_52] : memref<5x1x32xf32, #tpu.memory_space<vmem>>, vector<1x1x32xf32>
    %54 = vector.shape_cast %53 : vector<1x1x32xf32> to vector<1x32xf32>
    %55 = vector.broadcast %54 : vector<1x32xf32> to vector<8x32xf32>
    %56 = arith.addf %52, %55 : vector<8x32xf32>
    %cst_53 = arith.constant 5.000000e-01 : f32
    %57 = vector.broadcast %cst_53 : f32 to vector<8x32xf32>
    %58 = arith.mulf %57, %12 : vector<8x32xf32>
    %59 = math.tanh %58 : vector<8x32xf32>
    %cst_54 = arith.constant 5.000000e-01 : f32
    %60 = vector.broadcast %cst_54 : f32 to vector<8x32xf32>
    %61 = arith.mulf %60, %59 : vector<8x32xf32>
    %cst_55 = arith.constant 5.000000e-01 : f32
    %62 = vector.broadcast %cst_55 : f32 to vector<8x32xf32>
    %63 = arith.addf %61, %62 : vector<8x32xf32>
    %cst_56 = arith.constant 5.000000e-01 : f32
    %64 = vector.broadcast %cst_56 : f32 to vector<8x32xf32>
    %65 = arith.mulf %64, %23 : vector<8x32xf32>
    %66 = math.tanh %65 : vector<8x32xf32>
    %cst_57 = arith.constant 5.000000e-01 : f32
    %67 = vector.broadcast %cst_57 : f32 to vector<8x32xf32>
    %68 = arith.mulf %67, %66 : vector<8x32xf32>
    %cst_58 = arith.constant 5.000000e-01 : f32
    %69 = vector.broadcast %cst_58 : f32 to vector<8x32xf32>
    %70 = arith.addf %68, %69 : vector<8x32xf32>
    %cst_59 = arith.constant 5.000000e-01 : f32
    %71 = vector.broadcast %cst_59 : f32 to vector<8x32xf32>
    %72 = arith.mulf %71, %34 : vector<8x32xf32>
    %73 = math.tanh %72 : vector<8x32xf32>
    %cst_60 = arith.constant 5.000000e-01 : f32
    %74 = vector.broadcast %cst_60 : f32 to vector<8x32xf32>
    %75 = arith.mulf %74, %73 : vector<8x32xf32>
    %cst_61 = arith.constant 5.000000e-01 : f32
    %76 = vector.broadcast %cst_61 : f32 to vector<8x32xf32>
    %77 = arith.addf %75, %76 : vector<8x32xf32>
    %78 = math.tanh %45 : vector<8x32xf32>
    %cst_62 = arith.constant 5.000000e-01 : f32
    %79 = vector.broadcast %cst_62 : f32 to vector<8x32xf32>
    %80 = arith.mulf %79, %56 : vector<8x32xf32>
    %81 = math.tanh %80 : vector<8x32xf32>
    %cst_63 = arith.constant 5.000000e-01 : f32
    %82 = vector.broadcast %cst_63 : f32 to vector<8x32xf32>
    %83 = arith.mulf %82, %81 : vector<8x32xf32>
    %cst_64 = arith.constant 5.000000e-01 : f32
    %84 = vector.broadcast %cst_64 : f32 to vector<8x32xf32>
    %85 = arith.addf %83, %84 : vector<8x32xf32>
    %c0_65 = arith.constant 0 : index
    %c0_66 = arith.constant 0 : index
    %86 = vector.load %arg3[%c0_65, %c0_66] : memref<8x32xf32, #tpu.memory_space<vmem>>, vector<8x32xf32>
    %c0_67 = arith.constant 0 : index
    %c0_68 = arith.constant 0 : index
    %87 = vector.load %arg4[%c0_67, %c0_68] : memref<8x32xf32, #tpu.memory_space<vmem>>, vector<8x32xf32>
    %88 = arith.mulf %70, %86 : vector<8x32xf32>
    %89 = arith.mulf %77, %87 : vector<8x32xf32>
    %90 = arith.addf %88, %89 : vector<8x32xf32>
    %91 = arith.mulf %63, %78 : vector<8x32xf32>
    %92 = arith.addf %90, %91 : vector<8x32xf32>
    %93 = math.tanh %92 : vector<8x32xf32>
    %94 = arith.mulf %85, %93 : vector<8x32xf32>
    %c0_69 = arith.constant 0 : index
    %c0_70 = arith.constant 0 : index
    %95 = vector.load %arg8[%c0_69, %c0_70] : memref<8x32xf32, #tpu.memory_space<vmem>>, vector<8x32xf32>
    tpu.vector_store %arg8[%c0_69, %c0_70], %94 {strides = array<i32>} : memref<8x32xf32, #tpu.memory_space<vmem>>, vector<8x32xf32>,
    %c0_71 = arith.constant 0 : index
    %c0_72 = arith.constant 0 : index
    %96 = vector.load %arg9[%c0_71, %c0_72] : memref<8x32xf32, #tpu.memory_space<vmem>>, vector<8x32xf32>
    tpu.vector_store %arg9[%c0_71, %c0_72], %92 {strides = array<i32>} : memref<8x32xf32, #tpu.memory_space<vmem>>, vector<8x32xf32>,
    return
  }
  func.func @transform_0(%arg0: i32) -> (i32, i32) {
    %c0_i32 = arith.constant 0 : i32
    %c0_i32_0 = arith.constant 0 : i32
    return %arg0, %c0_i32 : i32, i32
  }
  func.func @transform_1(%arg0: i32) -> (i32, i32) {
    %c0_i32 = arith.constant 0 : i32
    %c0_i32_0 = arith.constant 0 : i32
    return %arg0, %c0_i32 : i32, i32
  }
  func.func @transform_2(%arg0: i32) -> (i32, i32) {
    %c0_i32 = arith.constant 0 : i32
    %c0_i32_0 = arith.constant 0 : i32
    return %arg0, %c0_i32 : i32, i32
  }
  func.func @transform_3(%arg0: i32) -> (i32, i32) {
    %c0_i32 = arith.constant 0 : i32
    %c0_i32_0 = arith.constant 0 : i32
    return %arg0, %c0_i32 : i32, i32
  }
  func.func @transform_4(%arg0: i32) -> (i32, i32, i32) {
    %c0_i32 = arith.constant 0 : i32
    %c0_i32_0 = arith.constant 0 : i32
    %c0_i32_1 = arith.constant 0 : i32
    %c0_i32_2 = arith.constant 0 : i32
    return %c0_i32, %c0_i32_0, %c0_i32_1 : i32, i32, i32
  }
  func.func @transform_5(%arg0: i32) -> (i32, i32, i32) {
    %c0_i32 = arith.constant 0 : i32
    %c0_i32_0 = arith.constant 0 : i32
    %c0_i32_1 = arith.constant 0 : i32
    %c0_i32_2 = arith.constant 0 : i32
    return %c0_i32, %c0_i32_0, %c0_i32_1 : i32, i32, i32
  }
  func.func @transform_6(%arg0: i32) -> (i32, i32, i32) {
    %c0_i32 = arith.constant 0 : i32
    %c0_i32_0 = arith.constant 0 : i32
    %c0_i32_1 = arith.constant 0 : i32
    %c0_i32_2 = arith.constant 0 : i32
    return %c0_i32, %c0_i32_0, %c0_i32_1 : i32, i32, i32
  }
  func.func @transform_7(%arg0: i32) -> (i32, i32) {
    %c0_i32 = arith.constant 0 : i32
    %c0_i32_0 = arith.constant 0 : i32
    return %arg0, %c0_i32 : i32, i32
  }
  func.func @transform_8(%arg0: i32) -> (i32, i32) {
    %c0_i32 = arith.constant 0 : i32
    %c0_i32_0 = arith.constant 0 : i32
    return %arg0, %c0_i32 : i32, i32
  }
}

</mosaic_0001>

<llo_original>
// kernel: tpu_custom_call.1
$region0: #{tpu_custom_call.1}
  #allocation0 [shape = 'u32[]', space=smem, size = 0x4, offset = 0x4, fixed_abs, tag = 'smem constant byte address 0x4 - core index']
  #allocation1 [shape = 'u32[72,128]{1,0:T(1,128)}', space=vmem, size = 0x9000, scoped, tag = 'internal scratch']
  %s0 = inlined_call_operand.hbm [shape: f32[8,32], index: 0, kind: input, shape index: {}]
  %s1 = inlined_call_operand.hbm [shape: f32[8,32], index: 1, kind: input, shape index: {}]
  %s2 = inlined_call_operand.hbm [shape: f32[8,32], index: 2, kind: input, shape index: {}]
  %s3 = inlined_call_operand.hbm [shape: f32[8,32], index: 3, kind: input, shape index: {}]
  %s4 = inlined_call_operand.hbm [shape: f32[5,32,32], index: 4, kind: input, shape index: {}]
  %s5 = inlined_call_operand.hbm [shape: f32[5,32,32], index: 5, kind: input, shape index: {}]
  %s6 = inlined_call_operand.vmem [shape: f32[5,1,32], index: 6, kind: input, shape index: {}]
  %s7 = inlined_call_operand.hbm [shape: f32[8,32], index: 7, kind: output, shape index: {0}]
  %s8 = inlined_call_operand.hbm [shape: f32[8,32], index: 8, kind: output, shape index: {1}]
  %9 = xla_tuple %s7, %s8
  %s10 = sld [smem:[#allocation0]]
  $region70: #{tpu_custom_call.1} parent=0
    _
  %s12 = ssub.s32 1, %s10
  %s13 = scalar_select 0, %s12, %s10
  $region1: #{tpu_custom_call.1} parent=0
    #allocation2 [shape = 'u8[4096]{0}', space=vmem, size = 0x1000, scoped, tag = 'input window, operand 0, single buffered']
    #allocation3 [shape = 's32[1]{0}', space=sflag, size = 0x4, scoped, tag = 'scoped memory for tpu_custom_call.1']
    #allocation4 [shape = 's32[1]{0}', space=sflag, size = 0x4, scoped, tag = 'scoped memory for tpu_custom_call.1']
    #allocation5 [shape = 'u8[4096]{0}', space=vmem, size = 0x1000, scoped, tag = 'input window, operand 1, single buffered']
    #allocation6 [shape = 's32[1]{0}', space=sflag, size = 0x4, scoped, tag = 'scoped memory for tpu_custom_call.1']
    #allocation7 [shape = 'u8[4096]{0}', space=vmem, size = 0x1000, scoped, tag = 'input window, operand 2, single buffered']
    #allocation8 [shape = 'u8[4096]{0}', space=vmem, size = 0x1000, scoped, tag = 'input window, operand 3, single buffered']
    #allocation9 [shape = 's32[1]{0}', space=sflag, size = 0x4, scoped, tag = 'scoped memory for tpu_custom_call.1']
    #allocation10 [shape = 'u8[81920]{0}', space=vmem, size = 0x14000, scoped, tag = 'input window, operand 4, single buffered']
    #allocation11 [shape = 'u8[81920]{0}', space=vmem, size = 0x14000, scoped, tag = 'input window, operand 5, single buffered']
    #allocation12 [shape = 's32[1]{0}', space=sflag, size = 0x4, scoped, tag = 'scoped memory for tpu_custom_call.1']
    #allocation13 [shape = 'u8[4096]{0}', space=vmem, size = 0x1000, scoped, tag = 'output window, operand 0, single buffered']
    #allocation14 [shape = 'u8[4096]{0}', space=vmem, size = 0x1000, scoped, tag = 'output window, operand 1, single buffered']
    #allocation15 [shape = 's32[1]{0}', space=sflag, size = 0x4, scoped, tag = 'scoped memory for tpu_custom_call.1']
    %14 = vsyncpa [#allocation3], 0
    %15 = vsyncpa [#allocation6], 0
    %16 = vsyncpa [#allocation9], 0
    %17 = vsyncpa [#allocation12], 0
    %18 = vsyncpa [#allocation4], 0
    %19 = vsyncpa [#allocation15], 0
    // Predicated region
    $region2: #{tpu_custom_call.1} parent=1 // pred_check
      _
    $region3: #{tpu_custom_call.1} parent=1 // pred_check_branch
      %21 = sbr.rel (0) target = $region5
    $region4: #{tpu_custom_call.1} parent=1 // pred_region
      %23 = vsyncadd [#allocation3], 0
      %s25 = sshll.u32 %s0, 4
      %s26 = int_to_ptr.hbm [resolvable:$true] %s25
      %s27 = sshll.u32 [#allocation2], 4
      %s28 = int_to_ptr.vmem [resolvable:$true] %s27
      %30 = dma.hbm_to_vmem [thread:$0]  %s26, 128, %s28, [#allocation3]
    $region5: #{tpu_custom_call.1} parent=1 // pred_fallthru
      _
    // Predicated region
    $region6: #{tpu_custom_call.1} parent=1 // pred_check
      _
    $region7: #{tpu_custom_call.1} parent=1 // pred_check_branch
      %32 = sbr.rel (0) target = $region9
    $region8: #{tpu_custom_call.1} parent=1 // pred_region
      %34 = vsyncadd [#allocation6], 0
      %s36 = sshll.u32 %s1, 4
      %s37 = int_to_ptr.hbm [resolvable:$true] %s36
      %s38 = sshll.u32 [#allocation5], 4
      %s39 = int_to_ptr.vmem [resolvable:$true] %s38
      %41 = dma.hbm_to_vmem [thread:$0]  %s37, 128, %s39, [#allocation6]
    $region9: #{tpu_custom_call.1} parent=1 // pred_fallthru
      _
    // Predicated region
    $region10: #{tpu_custom_call.1} parent=1 // pred_check
      _
    $region11: #{tpu_custom_call.1} parent=1 // pred_check_branch
      %43 = sbr.rel (0) target = $region13
    $region12: #{tpu_custom_call.1} parent=1 // pred_region
      %45 = vsyncadd [#allocation6], 0
      %s47 = sshll.u32 %s2, 4
      %s48 = int_to_ptr.hbm [resolvable:$true] %s47
      %s49 = sshll.u32 [#allocation7], 4
      %s50 = int_to_ptr.vmem [resolvable:$true] %s49
      %52 = dma.hbm_to_vmem [thread:$0]  %s48, 128, %s50, [#allocation6]
    $region13: #{tpu_custom_call.1} parent=1 // pred_fallthru
      _
    // Predicated region
    $region14: #{tpu_custom_call.1} parent=1 // pred_check
      _
    $region15: #{tpu_custom_call.1} parent=1 // pred_check_branch
      %54 = sbr.rel (0) target = $region17
    $region16: #{tpu_custom_call.1} parent=1 // pred_region
      %56 = vsyncadd [#allocation9], 0
      %s58 = sshll.u32 %s3, 4
      %s59 = int_to_ptr.hbm [resolvable:$true] %s58
      %s60 = sshll.u32 [#allocation8], 4
      %s61 = int_to_ptr.vmem [resolvable:$true] %s60
      %63 = dma.hbm_to_vmem [thread:$0]  %s59, 128, %s61, [#allocation9]
    $region17: #{tpu_custom_call.1} parent=1 // pred_fallthru
      _
    // Predicated region
    $region18: #{tpu_custom_call.1} parent=1 // pred_check
      _
    $region19: #{tpu_custom_call.1} parent=1 // pred_check_branch
      %65 = sbr.rel (0) target = $region21
    $region20: #{tpu_custom_call.1} parent=1 // pred_region
      %67 = vsyncadd [#allocation9], 0
      %s68 = sshll.u32 %s4, 4
      %s69 = int_to_ptr.hbm [resolvable:$true] %s68
      %s70 = sshll.u32 [#allocation10], 4
      %s71 = int_to_ptr.vmem [resolvable:$true] %s70
      %76 = dma.hbm_to_vmem [thread:$0]  %s69, 2560, %s71, [#allocation9], 128, 128, 8
    $region21: #{tpu_custom_call.1} parent=1 // pred_fallthru
      _
    // Predicated region
    $region22: #{tpu_custom_call.1} parent=1 // pred_check
      _
    $region23: #{tpu_custom_call.1} parent=1 // pred_check_branch
      %78 = sbr.rel (0) target = $region25
    $region24: #{tpu_custom_call.1} parent=1 // pred_region
      %80 = vsyncadd [#allocation12], 0
      %s81 = sshll.u32 %s5, 4
      %s82 = int_to_ptr.hbm [resolvable:$true] %s81
      %s83 = sshll.u32 [#allocation11], 4
      %s84 = int_to_ptr.vmem [resolvable:$true] %s83
      %89 = dma.hbm_to_vmem [thread:$0]  %s82, 2560, %s84, [#allocation12], 128, 128, 8
    $region25: #{tpu_custom_call.1} parent=1 // pred_fallthru
      _
    // Predicated region
    $region26: #{tpu_custom_call.1} parent=1 // pred_check
      _
    $region27: #{tpu_custom_call.1} parent=1 // pred_check_branch
      %91 = sbr.rel (0) target = $region29
    $region28: #{tpu_custom_call.1} parent=1 // pred_region
      _
    $region29: #{tpu_custom_call.1} parent=1 // pred_fallthru
      _
    // Predicated region
    $region30: #{tpu_custom_call.1} parent=1 // pred_check
      _
    $region31: #{tpu_custom_call.1} parent=1 // pred_check_branch
      %93 = sbr.rel (0) target = $region33
    $region32: #{tpu_custom_call.1} parent=1 // pred_region
      %95 = dma.done [#allocation3], 128
    $region33: #{tpu_custom_call.1} parent=1 // pred_fallthru
      _
    // Predicated region
    $region34: #{tpu_custom_call.1} parent=1 // pred_check
      _
    $region35: #{tpu_custom_call.1} parent=1 // pred_check_branch
      %97 = sbr.rel (0) target = $region37
    $region36: #{tpu_custom_call.1} parent=1 // pred_region
      %99 = dma.done [#allocation6], 128
    $region37: #{tpu_custom_call.1} parent=1 // pred_fallthru
      _
    // Predicated region
    $region38: #{tpu_custom_call.1} parent=1 // pred_check
      _
    $region39: #{tpu_custom_call.1} parent=1 // pred_check_branch
      %101 = sbr.rel (0) target = $region41
    $region40: #{tpu_custom_call.1} parent=1 // pred_region
      %103 = dma.done [#allocation6], 128
    $region41: #{tpu_custom_call.1} parent=1 // pred_fallthru
      _
    // Predicated region
    $region42: #{tpu_custom_call.1} parent=1 // pred_check
      _
    $region43: #{tpu_custom_call.1} parent=1 // pred_check_branch
      %105 = sbr.rel (0) target = $region45
    $region44: #{tpu_custom_call.1} parent=1 // pred_region
      %107 = dma.done [#allocation9], 128
    $region45: #{tpu_custom_call.1} parent=1 // pred_fallthru
      _
    // Predicated region
    $region46: #{tpu_custom_call.1} parent=1 // pred_check
      _
    $region47: #{tpu_custom_call.1} parent=1 // pred_check_branch
      %109 = sbr.rel (0) target = $region49
    $region48: #{tpu_custom_call.1} parent=1 // pred_region
      %111 = dma.done [#allocation9], 2560
    $region49: #{tpu_custom_call.1} parent=1 // pred_fallthru
      _
    // Predicated region
    $region50: #{tpu_custom_call.1} parent=1 // pred_check
      _
    $region51: #{tpu_custom_call.1} parent=1 // pred_check_branch
      %113 = sbr.rel (0) target = $region53
    $region52: #{tpu_custom_call.1} parent=1 // pred_region
      %115 = dma.done [#allocation12], 2560
    $region53: #{tpu_custom_call.1} parent=1 // pred_fallthru
      _
    %v116 = vld [vmem:[#allocation2] sm:$0xff]
    %v117 = vld [vmem:[#allocation5] sm:$0xff]
    %v118 = vld [vmem:[#allocation10] sm:$0xff]
    %v119 = vld [vmem:[#allocation10 + $0x8] sm:$0xff]
    %v120 = vld [vmem:[#allocation10 + $0x10] sm:$0xff]
    %v121 = vld [vmem:[#allocation10 + $0x18] sm:$0xff]
    %v122 = vld [vmem:[#allocation11] sm:$0xff]
    %v123 = vld [vmem:[#allocation11 + $0x8] sm:$0xff]
    %v124 = vld [vmem:[#allocation11 + $0x10] sm:$0xff]
    %v125 = vld [vmem:[#allocation11 + $0x18] sm:$0xff]
    %vm126 = vcmask 261120
    %v128 = vsel %vm126, %v117, 0
    %130 = vmatpush.msra.mxu0 0.0
    %131 = vmatpush.msra.mxu0 0.0
    %132 = vmatpush.msra.mxu0 0.0
    %133 = vmatpush.msra.mxu0 0.0
    %134 = vmatpush.msra.mxu0 0.0
    %135 = vmatpush.msra.mxu0 0.0
    %136 = vmatpush.msra.mxu0 0.0
    %137 = vmatpush.msra.mxu0 0.0
    %138 = vmatpush.msra.mxu0 0.0
    %139 = vmatpush.msra.mxu0 0.0
    %140 = vmatpush.msra.mxu0 0.0
    %141 = vmatpush.msra.mxu0 0.0
    %142 = vmatpush.msra.mxu0 %v125
    %143 = vmatpush.msra.mxu0 %v124
    %144 = vmatpush.msra.mxu0 %v123
    %145 = vmatpush.msra.mxu0 %v122
    %146 = vmatmul.f32.gmra.mxu0 %v128
    %v147 = vpop.f32.mrf.mxu0
    %v148 = vadd.f32 0.0, %v147
    %149 = vdwg.mxu0
    %v151 = vsel %vm126, %v116, 0
    %153 = vmatpush.msra.mxu0 0.0
    %154 = vmatpush.msra.mxu0 0.0
    %155 = vmatpush.msra.mxu0 0.0
    %156 = vmatpush.msra.mxu0 0.0
    %157 = vmatpush.msra.mxu0 0.0
    %158 = vmatpush.msra.mxu0 0.0
    %159 = vmatpush.msra.mxu0 0.0
    %160 = vmatpush.msra.mxu0 0.0
    %161 = vmatpush.msra.mxu0 0.0
    %162 = vmatpush.msra.mxu0 0.0
    %163 = vmatpush.msra.mxu0 0.0
    %164 = vmatpush.msra.mxu0 0.0
    %165 = vmatpush.msra.mxu0 %v121
    %166 = vmatpush.msra.mxu0 %v120
    %167 = vmatpush.msra.mxu0 %v119
    %168 = vmatpush.msra.mxu0 %v118
    %169 = vmatmul.f32.gmra.mxu0 %v151
    %v170 = vpop.f32.mrf.mxu0
    %v171 = vadd.f32 %v148, %v170
    %172 = vdwg.mxu0
    %v173 = vld [vmem:[%s6] sm:$0x1]
    %v175 = vperm.slane %v173, 0
    %v177 = vadd.f32 %v171, %v175
    %s178 = scalar_lea.vmem [#allocation10], 32
    %v179 = vld [vmem:[%s178] sm:$0xff]
    %v180 = vld [vmem:[%s178 + $0x8] sm:$0xff]
    %v181 = vld [vmem:[%s178 + $0x10] sm:$0xff]
    %v182 = vld [vmem:[%s178 + $0x18] sm:$0xff]
    %s183 = scalar_lea.vmem [#allocation11], 32
    %v184 = vld [vmem:[%s183] sm:$0xff]
    %v185 = vld [vmem:[%s183 + $0x8] sm:$0xff]
    %v186 = vld [vmem:[%s183 + $0x10] sm:$0xff]
    %v187 = vld [vmem:[%s183 + $0x18] sm:$0xff]
    %188 = vmatpush.msra.mxu0 0.0
    %189 = vmatpush.msra.mxu0 0.0
    %190 = vmatpush.msra.mxu0 0.0
    %191 = vmatpush.msra.mxu0 0.0
    %192 = vmatpush.msra.mxu0 0.0
    %193 = vmatpush.msra.mxu0 0.0
    %194 = vmatpush.msra.mxu0 0.0
    %195 = vmatpush.msra.mxu0 0.0
    %196 = vmatpush.msra.mxu0 0.0
    %197 = vmatpush.msra.mxu0 0.0
    %198 = vmatpush.msra.mxu0 0.0
    %199 = vmatpush.msra.mxu0 0.0
    %200 = vmatpush.msra.mxu0 %v187
    %201 = vmatpush.msra.mxu0 %v186
    %202 = vmatpush.msra.mxu0 %v185
    %203 = vmatpush.msra.mxu0 %v184
    %204 = vmatmul.f32.gmra.mxu0 %v128
    %v205 = vpop.f32.mrf.mxu0
    %v206 = vadd.f32 0.0, %v205
    %207 = vdwg.mxu0
    %208 = vmatpush.msra.mxu0 0.0
    %209 = vmatpush.msra.mxu0 0.0
    %210 = vmatpush.msra.mxu0 0.0
    %211 = vmatpush.msra.mxu0 0.0
    %212 = vmatpush.msra.mxu0 0.0
    %213 = vmatpush.msra.mxu0 0.0
    %214 = vmatpush.msra.mxu0 0.0
    %215 = vmatpush.msra.mxu0 0.0
    %216 = vmatpush.msra.mxu0 0.0
    %217 = vmatpush.msra.mxu0 0.0
    %218 = vmatpush.msra.mxu0 0.0
    %219 = vmatpush.msra.mxu0 0.0
    %220 = vmatpush.msra.mxu0 %v182
    %221 = vmatpush.msra.mxu0 %v181
    %222 = vmatpush.msra.mxu0 %v180
    %223 = vmatpush.msra.mxu0 %v179
    %224 = vmatmul.f32.gmra.mxu0 %v151
    %v225 = vpop.f32.mrf.mxu0
    %v226 = vadd.f32 %v206, %v225
    %227 = vdwg.mxu0
    %s228 = scalar_lea.vmem %s6, 1
    %v229 = vld [vmem:[%s228] sm:$0x1]
    %v231 = vperm.slane %v229, 0
    %v233 = vadd.f32 %v226, %v231
    %s234 = scalar_lea.vmem [#allocation10], 64
    %v235 = vld [vmem:[%s234] sm:$0xff]
    %v236 = vld [vmem:[%s234 + $0x8] sm:$0xff]
    %v237 = vld [vmem:[%s234 + $0x10] sm:$0xff]
    %v238 = vld [vmem:[%s234 + $0x18] sm:$0xff]
    %s239 = scalar_lea.vmem [#allocation11], 64
    %v240 = vld [vmem:[%s239] sm:$0xff]
    %v241 = vld [vmem:[%s239 + $0x8] sm:$0xff]
    %v242 = vld [vmem:[%s239 + $0x10] sm:$0xff]
    %v243 = vld [vmem:[%s239 + $0x18] sm:$0xff]
    %244 = vmatpush.msra.mxu0 0.0
    %245 = vmatpush.msra.mxu0 0.0
    %246 = vmatpush.msra.mxu0 0.0
    %247 = vmatpush.msra.mxu0 0.0
    %248 = vmatpush.msra.mxu0 0.0
    %249 = vmatpush.msra.mxu0 0.0
    %250 = vmatpush.msra.mxu0 0.0
    %251 = vmatpush.msra.mxu0 0.0
    %252 = vmatpush.msra.mxu0 0.0
    %253 = vmatpush.msra.mxu0 0.0
    %254 = vmatpush.msra.mxu0 0.0
    %255 = vmatpush.msra.mxu0 0.0
    %256 = vmatpush.msra.mxu0 %v243
    %257 = vmatpush.msra.mxu0 %v242
    %258 = vmatpush.msra.mxu0 %v241
    %259 = vmatpush.msra.mxu0 %v240
    %260 = vmatmul.f32.gmra.mxu0 %v128
    %v261 = vpop.f32.mrf.mxu0
    %v262 = vadd.f32 0.0, %v261
    %263 = vdwg.mxu0
    %264 = vmatpush.msra.mxu0 0.0
    %265 = vmatpush.msra.mxu0 0.0
    %266 = vmatpush.msra.mxu0 0.0
    %267 = vmatpush.msra.mxu0 0.0
    %268 = vmatpush.msra.mxu0 0.0
    %269 = vmatpush.msra.mxu0 0.0
    %270 = vmatpush.msra.mxu0 0.0
    %271 = vmatpush.msra.mxu0 0.0
    %272 = vmatpush.msra.mxu0 0.0
    %273 = vmatpush.msra.mxu0 0.0
    %274 = vmatpush.msra.mxu0 0.0
    %275 = vmatpush.msra.mxu0 0.0
    %276 = vmatpush.msra.mxu0 %v238
    %277 = vmatpush.msra.mxu0 %v237
    %278 = vmatpush.msra.mxu0 %v236
    %279 = vmatpush.msra.mxu0 %v235
    %280 = vmatmul.f32.gmra.mxu0 %v151
    %v281 = vpop.f32.mrf.mxu0
    %v282 = vadd.f32 %v262, %v281
    %283 = vdwg.mxu0
    %s284 = scalar_lea.vmem %s6, 2
    %v285 = vld [vmem:[%s284] sm:$0x1]
    %v287 = vperm.slane %v285, 0
    %v289 = vadd.f32 %v282, %v287
    %s290 = scalar_lea.vmem [#allocation10], 96
    %v291 = vld [vmem:[%s290] sm:$0xff]
    %v292 = vld [vmem:[%s290 + $0x8] sm:$0xff]
    %v293 = vld [vmem:[%s290 + $0x10] sm:$0xff]
    %v294 = vld [vmem:[%s290 + $0x18] sm:$0xff]
    %s295 = scalar_lea.vmem [#allocation11], 96
    %v296 = vld [vmem:[%s295] sm:$0xff]
    %v297 = vld [vmem:[%s295 + $0x8] sm:$0xff]
    %v298 = vld [vmem:[%s295 + $0x10] sm:$0xff]
    %v299 = vld [vmem:[%s295 + $0x18] sm:$0xff]
    %300 = vmatpush.msra.mxu0 0.0
    %301 = vmatpush.msra.mxu0 0.0
    %302 = vmatpush.msra.mxu0 0.0
    %303 = vmatpush.msra.mxu0 0.0
    %304 = vmatpush.msra.mxu0 0.0
    %305 = vmatpush.msra.mxu0 0.0
    %306 = vmatpush.msra.mxu0 0.0
    %307 = vmatpush.msra.mxu0 0.0
    %308 = vmatpush.msra.mxu0 0.0
    %309 = vmatpush.msra.mxu0 0.0
    %310 = vmatpush.msra.mxu0 0.0
    %311 = vmatpush.msra.mxu0 0.0
    %312 = vmatpush.msra.mxu0 %v299
    %313 = vmatpush.msra.mxu0 %v298
    %314 = vmatpush.msra.mxu0 %v297
    %315 = vmatpush.msra.mxu0 %v296
    %316 = vmatmul.f32.gmra.mxu0 %v128
    %v317 = vpop.f32.mrf.mxu0
    %v318 = vadd.f32 0.0, %v317
    %319 = vdwg.mxu0
    %320 = vmatpush.msra.mxu0 0.0
    %321 = vmatpush.msra.mxu0 0.0
    %322 = vmatpush.msra.mxu0 0.0
    %323 = vmatpush.msra.mxu0 0.0
    %324 = vmatpush.msra.mxu0 0.0
    %325 = vmatpush.msra.mxu0 0.0
    %326 = vmatpush.msra.mxu0 0.0
    %327 = vmatpush.msra.mxu0 0.0
    %328 = vmatpush.msra.mxu0 0.0
    %329 = vmatpush.msra.mxu0 0.0
    %330 = vmatpush.msra.mxu0 0.0
    %331 = vmatpush.msra.mxu0 0.0
    %332 = vmatpush.msra.mxu0 %v294
    %333 = vmatpush.msra.mxu0 %v293
    %334 = vmatpush.msra.mxu0 %v292
    %335 = vmatpush.msra.mxu0 %v291
    %336 = vmatmul.f32.gmra.mxu0 %v151
    %v337 = vpop.f32.mrf.mxu0
    %v338 = vadd.f32 %v318, %v337
    %339 = vdwg.mxu0
    %s340 = scalar_lea.vmem %s6, 3
    %v341 = vld [vmem:[%s340] sm:$0x1]
    %v343 = vperm.slane %v341, 0
    %v345 = vadd.f32 %v338, %v343
    %s346 = scalar_lea.vmem [#allocation10], 128
    %v347 = vld [vmem:[%s346] sm:$0xff]
    %v348 = vld [vmem:[%s346 + $0x8] sm:$0xff]
    %v349 = vld [vmem:[%s346 + $0x10] sm:$0xff]
    %v350 = vld [vmem:[%s346 + $0x18] sm:$0xff]
    %s351 = scalar_lea.vmem [#allocation11], 128
    %v352 = vld [vmem:[%s351] sm:$0xff]
    %v353 = vld [vmem:[%s351 + $0x8] sm:$0xff]
    %v354 = vld [vmem:[%s351 + $0x10] sm:$0xff]
    %v355 = vld [vmem:[%s351 + $0x18] sm:$0xff]
    %356 = vmatpush.msra.mxu0 0.0
    %357 = vmatpush.msra.mxu0 0.0
    %358 = vmatpush.msra.mxu0 0.0
    %359 = vmatpush.msra.mxu0 0.0
    %360 = vmatpush.msra.mxu0 0.0
    %361 = vmatpush.msra.mxu0 0.0
    %362 = vmatpush.msra.mxu0 0.0
    %363 = vmatpush.msra.mxu0 0.0
    %364 = vmatpush.msra.mxu0 0.0
    %365 = vmatpush.msra.mxu0 0.0
    %366 = vmatpush.msra.mxu0 0.0
    %367 = vmatpush.msra.mxu0 0.0
    %368 = vmatpush.msra.mxu0 %v355
    %369 = vmatpush.msra.mxu0 %v354
    %370 = vmatpush.msra.mxu0 %v353
    %371 = vmatpush.msra.mxu0 %v352
    %372 = vmatmul.f32.gmra.mxu0 %v128
    %v373 = vpop.f32.mrf.mxu0
    %v374 = vadd.f32 0.0, %v373
    %375 = vdwg.mxu0
    %376 = vmatpush.msra.mxu0 0.0
    %377 = vmatpush.msra.mxu0 0.0
    %378 = vmatpush.msra.mxu0 0.0
    %379 = vmatpush.msra.mxu0 0.0
    %380 = vmatpush.msra.mxu0 0.0
    %381 = vmatpush.msra.mxu0 0.0
    %382 = vmatpush.msra.mxu0 0.0
    %383 = vmatpush.msra.mxu0 0.0
    %384 = vmatpush.msra.mxu0 0.0
    %385 = vmatpush.msra.mxu0 0.0
    %386 = vmatpush.msra.mxu0 0.0
    %387 = vmatpush.msra.mxu0 0.0
    %388 = vmatpush.msra.mxu0 %v350
    %389 = vmatpush.msra.mxu0 %v349
    %390 = vmatpush.msra.mxu0 %v348
    %391 = vmatpush.msra.mxu0 %v347
    %392 = vmatmul.f32.gmra.mxu0 %v151
    %v393 = vpop.f32.mrf.mxu0
    %v394 = vadd.f32 %v374, %v393
    %395 = vdwg.mxu0
    %s396 = scalar_lea.vmem %s6, 4
    %v397 = vld [vmem:[%s396] sm:$0x1]
    %v399 = vperm.slane %v397, 0
    %v401 = vadd.f32 %v394, %v399
    %v402 = vmul.f32 %v177, 0.5
    %v403 = vtanh.pop %v402
    %v404 = vmul.f32 %v403, 0.5
    %v405 = vadd.f32 %v404, 0.5
    %v406 = vmul.f32 %v233, 0.5
    %v407 = vtanh.pop %v406
    %v408 = vmul.f32 %v407, 0.5
    %v409 = vadd.f32 %v408, 0.5
    %v410 = vmul.f32 %v289, 0.5
    %v411 = vtanh.pop %v410
    %v412 = vmul.f32 %v411, 0.5
    %v413 = vadd.f32 %v412, 0.5
    %v414 = vtanh.pop %v345
    %v415 = vmul.f32 %v401, 0.5
    %v416 = vtanh.pop %v415
    %v417 = vmul.f32 %v416, 0.5
    %v418 = vadd.f32 %v417, 0.5
    %v419 = vld [vmem:[#allocation7] sm:$0xff]
    %v420 = vld [vmem:[#allocation8] sm:$0xff]
    %v421 = vmul.f32 %v409, %v419
    %v422 = vmul.f32 %v413, %v420
    %v423 = vadd.f32 %v421, %v422
    %v424 = vmul.f32 %v405, %v414
    %v425 = vadd.f32 %v423, %v424
    %v426 = vtanh.pop %v425
    %v427 = vmul.f32 %v418, %v426
    %428 = vst.msk [vmem:[#allocation13] sm:$0xff] %vm126, %v427
    %429 = vst.msk [vmem:[#allocation14] sm:$0xff] %vm126, %v425
    // Predicated region
    $region54: #{tpu_custom_call.1} parent=1 // pred_check
      _
    $region55: #{tpu_custom_call.1} parent=1 // pred_check_branch
      %431 = sbr.rel (0) target = $region57
    $region56: #{tpu_custom_call.1} parent=1 // pred_region
      %433 = vsyncadd [#allocation4], 0
      %s435 = sshll.u32 [#allocation13], 4
      %s436 = int_to_ptr.vmem [resolvable:$true] %s435
      %s437 = sshll.u32 %s7, 4
      %s438 = int_to_ptr.hbm [resolvable:$true] %s437
      %440 = dma.vmem_to_hbm [thread:$0]  %s436, 128, %s438, [#allocation4]
    $region57: #{tpu_custom_call.1} parent=1 // pred_fallthru
      _
    // Predicated region
    $region58: #{tpu_custom_call.1} parent=1 // pred_check
      _
    $region59: #{tpu_custom_call.1} parent=1 // pred_check_branch
      %442 = sbr.rel (0) target = $region61
    $region60: #{tpu_custom_call.1} parent=1 // pred_region
      %444 = vsyncadd [#allocation15], 0
      %s446 = sshll.u32 [#allocation14], 4
      %s447 = int_to_ptr.vmem [resolvable:$true] %s446
      %s448 = sshll.u32 %s8, 4
      %s449 = int_to_ptr.hbm [resolvable:$true] %s448
      %451 = dma.vmem_to_hbm [thread:$0]  %s447, 128, %s449, [#allocation15]
    $region61: #{tpu_custom_call.1} parent=1 // pred_fallthru
      _
    // Predicated region
    $region62: #{tpu_custom_call.1} parent=1 // pred_check
      _
    $region63: #{tpu_custom_call.1} parent=1 // pred_check_branch
      %453 = sbr.rel (0) target = $region65
    $region64: #{tpu_custom_call.1} parent=1 // pred_region
      %455 = dma.done [#allocation4], 128
    $region65: #{tpu_custom_call.1} parent=1 // pred_fallthru
      _
    // Predicated region
    $region66: #{tpu_custom_call.1} parent=1 // pred_check
      _
    $region67: #{tpu_custom_call.1} parent=1 // pred_check_branch
      %457 = sbr.rel (0) target = $region69
    $region68: #{tpu_custom_call.1} parent=1 // pred_region
      %459 = dma.done [#allocation15], 128
    $region69: #{tpu_custom_call.1} parent=1 // pred_fallthru
      _
    %460 = vsyncpa [#allocation3], 1
    %461 = vsyncpa [#allocation6], 1
    %462 = vsyncpa [#allocation9], 1
    %463 = vsyncpa [#allocation12], 1
    %464 = vsyncpa [#allocation4], 1
    %465 = vsyncpa [#allocation15], 1

// kernel: tpu_custom_call.1
$region0: #{tpu_custom_call.1}
  #allocation0 [shape = 'u32[]', space=smem, size = 0x4, offset = 0x4, fixed_abs, tag = 'smem constant byte address 0x4 - core index']
  #allocation1 [shape = 'u32[72,128]{1,0:T(1,128)}', space=vmem, size = 0x9000, scoped, tag = 'internal scratch']
  %s0 = inlined_call_operand.hbm [shape: f32[8,32], index: 0, kind: input, shape index: {}]
  %s1 = inlined_call_operand.hbm [shape: f32[8,32], index: 1, kind: input, shape index: {}]
  %s2 = inlined_call_operand.hbm [shape: f32[8,32], index: 2, kind: input, shape index: {}]
  %s3 = inlined_call_operand.hbm [shape: f32[8,32], index: 3, kind: input, shape index: {}]
  %s4 = inlined_call_operand.hbm [shape: f32[5,32,32], index: 4, kind: input, shape index: {}]
  %s5 = inlined_call_operand.hbm [shape: f32[5,32,32], index: 5, kind: input, shape index: {}]
  %s6 = inlined_call_operand.vmem [shape: f32[5,1,32], index: 6, kind: input, shape index: {}]
  %s7 = inlined_call_operand.hbm [shape: f32[8,32], index: 7, kind: output, shape index: {0}]
  %s8 = inlined_call_operand.hbm [shape: f32[8,32], index: 8, kind: output, shape index: {1}]
  %9 = xla_tuple %s7, %s8
  %s10 = sld [smem:[#allocation0]]
  $region70: #{tpu_custom_call.1} parent=0
    _
  %s12 = ssub.s32 1, %s10
  %s13 = scalar_select 0, %s12, %s10
  $region1: #{tpu_custom_call.1} parent=0
    #allocation2 [shape = 'u8[4096]{0}', space=vmem, size = 0x1000, scoped, tag = 'input window, operand 0, single buffered']
    #allocation3 [shape = 's32[1]{0}', space=sflag, size = 0x4, scoped, tag = 'scoped memory for tpu_custom_call.1']
    #allocation4 [shape = 's32[1]{0}', space=sflag, size = 0x4, scoped, tag = 'scoped memory for tpu_custom_call.1']
    #allocation5 [shape = 'u8[4096]{0}', space=vmem, size = 0x1000, scoped, tag = 'input window, operand 1, single buffered']
    #allocation6 [shape = 's32[1]{0}', space=sflag, size = 0x4, scoped, tag = 'scoped memory for tpu_custom_call.1']
    #allocation7 [shape = 'u8[4096]{0}', space=vmem, size = 0x1000, scoped, tag = 'input window, operand 2, single buffered']
    #allocation8 [shape = 'u8[4096]{0}', space=vmem, size = 0x1000, scoped, tag = 'input window, operand 3, single buffered']
    #allocation9 [shape = 's32[1]{0}', space=sflag, size = 0x4, scoped, tag = 'scoped memory for tpu_custom_call.1']
    #allocation10 [shape = 'u8[81920]{0}', space=vmem, size = 0x14000, scoped, tag = 'input window, operand 4, single buffered']
    #allocation11 [shape = 'u8[81920]{0}', space=vmem, size = 0x14000, scoped, tag = 'input window, operand 5, single buffered']
    #allocation12 [shape = 's32[1]{0}', space=sflag, size = 0x4, scoped, tag = 'scoped memory for tpu_custom_call.1']
    #allocation13 [shape = 'u8[4096]{0}', space=vmem, size = 0x1000, scoped, tag = 'output window, operand 0, single buffered']
    #allocation14 [shape = 'u8[4096]{0}', space=vmem, size = 0x1000, scoped, tag = 'output window, operand 1, single buffered']
    #allocation15 [shape = 's32[1]{0}', space=sflag, size = 0x4, scoped, tag = 'scoped memory for tpu_custom_call.1']
    %14 = vsyncpa [#allocation3], 0
    %15 = vsyncpa [#allocation6], 0
    %16 = vsyncpa [#allocation9], 0
    %17 = vsyncpa [#allocation12], 0
    %18 = vsyncpa [#allocation4], 0
    %19 = vsyncpa [#allocation15], 0
    // Predicated region
    $region2: #{tpu_custom_call.1} parent=1 // pred_check
      _
    $region3: #{tpu_custom_call.1} parent=1 // pred_check_branch
      %21 = sbr.rel (0) target = $region5
    $region4: #{tpu_custom_call.1} parent=1 // pred_region
      %23 = vsyncadd [#allocation3], 0
      %s25 = sshll.u32 %s0, 4
      %s26 = int_to_ptr.hbm [resolvable:$true] %s25
      %s27 = sshll.u32 [#allocation2], 4
      %s28 = int_to_ptr.vmem [resolvable:$true] %s27
      %30 = dma.hbm_to_vmem [thread:$0]  %s26, 128, %s28, [#allocation3]
    $region5: #{tpu_custom_call.1} parent=1 // pred_fallthru
      _
    // Predicated region
    $region6: #{tpu_custom_call.1} parent=1 // pred_check
      _
    $region7: #{tpu_custom_call.1} parent=1 // pred_check_branch
      %32 = sbr.rel (0) target = $region9
    $region8: #{tpu_custom_call.1} parent=1 // pred_region
      %34 = vsyncadd [#allocation6], 0
      %s36 = sshll.u32 %s1, 4
      %s37 = int_to_ptr.hbm [resolvable:$true] %s36
      %s38 = sshll.u32 [#allocation5], 4
      %s39 = int_to_ptr.vmem [resolvable:$true] %s38
      %41 = dma.hbm_to_vmem [thread:$0]  %s37, 128, %s39, [#allocation6]
    $region9: #{tpu_custom_call.1} parent=1 // pred_fallthru
      _
    // Predicated region
    $region10: #{tpu_custom_call.1} parent=1 // pred_check
      _
    $region11: #{tpu_custom_call.1} parent=1 // pred_check_branch
      %43 = sbr.rel (0) target = $region13
    $region12: #{tpu_custom_call.1} parent=1 // pred_region
      %45 = vsyncadd [#allocation6], 0
      %s47 = sshll.u32 %s2, 4
      %s48 = int_to_ptr.hbm [resolvable:$true] %s47
      %s49 = sshll.u32 [#allocation7], 4
      %s50 = int_to_ptr.vmem [resolvable:$true] %s49
      %52 = dma.hbm_to_vmem [thread:$0]  %s48, 128, %s50, [#allocation6]
    $region13: #{tpu_custom_call.1} parent=1 // pred_fallthru
      _
    // Predicated region
    $region14: #{tpu_custom_call.1} parent=1 // pred_check
      _
    $region15: #{tpu_custom_call.1} parent=1 // pred_check_branch
      %54 = sbr.rel (0) target = $region17
    $region16: #{tpu_custom_call.1} parent=1 // pred_region
      %56 = vsyncadd [#allocation9], 0
      %s58 = sshll.u32 %s3, 4
      %s59 = int_to_ptr.hbm [resolvable:$true] %s58
      %s60 = sshll.u32 [#allocation8], 4
      %s61 = int_to_ptr.vmem [resolvable:$true] %s60
      %63 = dma.hbm_to_vmem [thread:$0]  %s59, 128, %s61, [#allocation9]
    $region17: #{tpu_custom_call.1} parent=1 // pred_fallthru
      _
    // Predicated region
    $region18: #{tpu_custom_call.1} parent=1 // pred_check
      _
    $region19: #{tpu_custom_call.1} parent=1 // pred_check_branch
      %65 = sbr.rel (0) target = $region21
    $region20: #{tpu_custom_call.1} parent=1 // pred_region
      %67 = vsyncadd [#allocation9], 0
      %s68 = sshll.u32 %s4, 4
      %s69 = int_to_ptr.hbm [resolvable:$true] %s68
      %s70 = sshll.u32 [#allocation10], 4
      %s71 = int_to_ptr.vmem [resolvable:$true] %s70
      %76 = dma.hbm_to_vmem [thread:$0]  %s69, 2560, %s71, [#allocation9], 128, 128, 8
    $region21: #{tpu_custom_call.1} parent=1 // pred_fallthru
      _
    // Predicated region
    $region22: #{tpu_custom_call.1} parent=1 // pred_check
      _
    $region23: #{tpu_custom_call.1} parent=1 // pred_check_branch
      %78 = sbr.rel (0) target = $region25
    $region24: #{tpu_custom_call.1} parent=1 // pred_region
      %80 = vsyncadd [#allocation12], 0
      %s81 = sshll.u32 %s5, 4
      %s82 = int_to_ptr.hbm [resolvable:$true] %s81
      %s83 = sshll.u32 [#allocation11], 4
      %s84 = int_to_ptr.vmem [resolvable:$true] %s83
      %89 = dma.hbm_to_vmem [thread:$0]  %s82, 2560, %s84, [#allocation12], 128, 128, 8
    $region25: #{tpu_custom_call.1} parent=1 // pred_fallthru
      _
    // Predicated region
    $region26: #{tpu_custom_call.1} parent=1 // pred_check
      _
    $region27: #{tpu_custom_call.1} parent=1 // pred_check_branch
      %91 = sbr.rel (0) target = $region29
    $region28: #{tpu_custom_call.1} parent=1 // pred_region
      _
    $region29: #{tpu_custom_call.1} parent=1 // pred_fallthru
      _
    // Predicated region
    $region30: #{tpu_custom_call.1} parent=1 // pred_check
      _
    $region31: #{tpu_custom_call.1} parent=1 // pred_check_branch
      %93 = sbr.rel (0) target = $region33
    $region32: #{tpu_custom_call.1} parent=1 // pred_region
      %95 = dma.done [#allocation3], 128
    $region33: #{tpu_custom_call.1} parent=1 // pred_fallthru
      _
    // Predicated region
    $region34: #{tpu_custom_call.1} parent=1 // pred_check
      _
    $region35: #{tpu_custom_call.1} parent=1 // pred_check_branch
      %97 = sbr.rel (0) target = $region37
    $region36: #{tpu_custom_call.1} parent=1 // pred_region
      %99 = dma.done [#allocation6], 128
    $region37: #{tpu_custom_call.1} parent=1 // pred_fallthru
      _
    // Predicated region
    $region38: #{tpu_custom_call.1} parent=1 // pred_check
      _
    $region39: #{tpu_custom_call.1} parent=1 // pred_check_branch
      %101 = sbr.rel (0) target = $region41
    $region40: #{tpu_custom_call.1} parent=1 // pred_region
      %103 = dma.done [#allocation6], 128
    $region41: #{tpu_custom_call.1} parent=1 // pred_fallthru
      _
    // Predicated region
    $region42: #{tpu_custom_call.1} parent=1 // pred_check
      _
    $region43: #{tpu_custom_call.1} parent=1 // pred_check_branch
      %105 = sbr.rel (0) target = $region45
    $region44: #{tpu_custom_call.1} parent=1 // pred_region
      %107 = dma.done [#allocation9], 128
    $region45: #{tpu_custom_call.1} parent=1 // pred_fallthru
      _
    // Predicated region
    $region46: #{tpu_custom_call.1} parent=1 // pred_check
      _
    $region47: #{tpu_custom_call.1} parent=1 // pred_check_branch
      %109 = sbr.rel (0) target = $region49
    $region48: #{tpu_custom_call.1} parent=1 // pred_region
      %111 = dma.done [#allocation9], 2560
    $region49: #{tpu_custom_call.1} parent=1 // pred_fallthru
      _
    // Predicated region
    $region50: #{tpu_custom_call.1} parent=1 // pred_check
      _
    $region51: #{tpu_custom_call.1} parent=1 // pred_check_branch
      %113 = sbr.rel (0) target = $region53
    $region52: #{tpu_custom_call.1} parent=1 // pred_region
      %115 = dma.done [#allocation12], 2560
    $region53: #{tpu_custom_call.1} parent=1 // pred_fallthru
      _
    %v116 = vld [vmem:[#allocation2] sm:$0xff]
    %v117 = vld [vmem:[#allocation5] sm:$0xff]
    %v118 = vld [vmem:[#allocation10] sm:$0xff]
    %v119 = vld [vmem:[#allocation10 + $0x8] sm:$0xff]
    %v120 = vld [vmem:[#allocation10 + $0x10] sm:$0xff]
    %v121 = vld [vmem:[#allocation10 + $0x18] sm:$0xff]
    %v122 = vld [vmem:[#allocation11] sm:$0xff]
    %v123 = vld [vmem:[#allocation11 + $0x8] sm:$0xff]
    %v124 = vld [vmem:[#allocation11 + $0x10] sm:$0xff]
    %v125 = vld [vmem:[#allocation11 + $0x18] sm:$0xff]
    %vm126 = vcmask 261120
    %v128 = vsel %vm126, %v117, 0
    %130 = vmatpush.msra.mxu0 0.0
    %131 = vmatpush.msra.mxu0 0.0
    %132 = vmatpush.msra.mxu0 0.0
    %133 = vmatpush.msra.mxu0 0.0
    %134 = vmatpush.msra.mxu0 0.0
    %135 = vmatpush.msra.mxu0 0.0
    %136 = vmatpush.msra.mxu0 0.0
    %137 = vmatpush.msra.mxu0 0.0
    %138 = vmatpush.msra.mxu0 0.0
    %139 = vmatpush.msra.mxu0 0.0
    %140 = vmatpush.msra.mxu0 0.0
    %141 = vmatpush.msra.mxu0 0.0
    %142 = vmatpush.msra.mxu0 %v125
    %143 = vmatpush.msra.mxu0 %v124
    %144 = vmatpush.msra.mxu0 %v123
    %145 = vmatpush.msra.mxu0 %v122
    %146 = vmatmul.f32.gmra.mxu0 %v128
    %v147 = vpop.f32.mrf.mxu0
    %v148 = vadd.f32 0.0, %v147
    %149 = vdwg.mxu0
    %v151 = vsel %vm126, %v116, 0
    %153 = vmatpush.msra.mxu0 0.0
    %154 = vmatpush.msra.mxu0 0.0
    %155 = vmatpush.msra.mxu0 0.0
    %156 = vmatpush.msra.mxu0 0.0
    %157 = vmatpush.msra.mxu0 0.0
    %158 = vmatpush.msra.mxu0 0.0
    %159 = vmatpush.msra.mxu0 0.0
    %160 = vmatpush.msra.mxu0 0.0
    %161 = vmatpush.msra.mxu0 0.0
    %162 = vmatpush.msra.mxu0 0.0
    %163 = vmatpush.msra.mxu0 0.0
    %164 = vmatpush.msra.mxu0 0.0
    %165 = vmatpush.msra.mxu0 %v121
    %166 = vmatpush.msra.mxu0 %v120
    %167 = vmatpush.msra.mxu0 %v119
    %168 = vmatpush.msra.mxu0 %v118
    %169 = vmatmul.f32.gmra.mxu0 %v151
    %v170 = vpop.f32.mrf.mxu0
    %v171 = vadd.f32 %v148, %v170
    %172 = vdwg.mxu0
    %v173 = vld [vmem:[%s6] sm:$0x1]
    %v175 = vperm.slane %v173, 0
    %v177 = vadd.f32 %v171, %v175
    %s178 = scalar_lea.vmem [#allocation10], 32
    %v179 = vld [vmem:[%s178] sm:$0xff]
    %v180 = vld [vmem:[%s178 + $0x8] sm:$0xff]
    %v181 = vld [vmem:[%s178 + $0x10] sm:$0xff]
    %v182 = vld [vmem:[%s178 + $0x18] sm:$0xff]
    %s183 = scalar_lea.vmem [#allocation11], 32
    %v184 = vld [vmem:[%s183] sm:$0xff]
    %v185 = vld [vmem:[%s183 + $0x8] sm:$0xff]
    %v186 = vld [vmem:[%s183 + $0x10] sm:$0xff]
    %v187 = vld [vmem:[%s183 + $0x18] sm:$0xff]
    %188 = vmatpush.msra.mxu0 0.0
    %189 = vmatpush.msra.mxu0 0.0
    %190 = vmatpush.msra.mxu0 0.0
    %191 = vmatpush.msra.mxu0 0.0
    %192 = vmatpush.msra.mxu0 0.0
    %193 = vmatpush.msra.mxu0 0.0
    %194 = vmatpush.msra.mxu0 0.0
    %195 = vmatpush.msra.mxu0 0.0
    %196 = vmatpush.msra.mxu0 0.0
    %197 = vmatpush.msra.mxu0 0.0
    %198 = vmatpush.msra.mxu0 0.0
    %199 = vmatpush.msra.mxu0 0.0
    %200 = vmatpush.msra.mxu0 %v187
    %201 = vmatpush.msra.mxu0 %v186
    %202 = vmatpush.msra.mxu0 %v185
    %203 = vmatpush.msra.mxu0 %v184
    %204 = vmatmul.f32.gmra.mxu0 %v128
    %v205 = vpop.f32.mrf.mxu0
    %v206 = vadd.f32 0.0, %v205
    %207 = vdwg.mxu0
    %208 = vmatpush.msra.mxu0 0.0
    %209 = vmatpush.msra.mxu0 0.0
    %210 = vmatpush.msra.mxu0 0.0
    %211 = vmatpush.msra.mxu0 0.0
    %212 = vmatpush.msra.mxu0 0.0
    %213 = vmatpush.msra.mxu0 0.0
    %214 = vmatpush.msra.mxu0 0.0
    %215 = vmatpush.msra.mxu0 0.0
    %216 = vmatpush.msra.mxu0 0.0
    %217 = vmatpush.msra.mxu0 0.0
    %218 = vmatpush.msra.mxu0 0.0
    %219 = vmatpush.msra.mxu0 0.0
    %220 = vmatpush.msra.mxu0 %v182
    %221 = vmatpush.msra.mxu0 %v181
    %222 = vmatpush.msra.mxu0 %v180
    %223 = vmatpush.msra.mxu0 %v179
    %224 = vmatmul.f32.gmra.mxu0 %v151
    %v225 = vpop.f32.mrf.mxu0
    %v226 = vadd.f32 %v206, %v225
    %227 = vdwg.mxu0
    %s228 = scalar_lea.vmem %s6, 1
    %v229 = vld [vmem:[%s228] sm:$0x1]
    %v231 = vperm.slane %v229, 0
    %v233 = vadd.f32 %v226, %v231
    %s234 = scalar_lea.vmem [#allocation10], 64
    %v235 = vld [vmem:[%s234] sm:$0xff]
    %v236 = vld [vmem:[%s234 + $0x8] sm:$0xff]
    %v237 = vld [vmem:[%s234 + $0x10] sm:$0xff]
    %v238 = vld [vmem:[%s234 + $0x18] sm:$0xff]
    %s239 = scalar_lea.vmem [#allocation11], 64
    %v240 = vld [vmem:[%s239] sm:$0xff]
    %v241 = vld [vmem:[%s239 + $0x8] sm:$0xff]
    %v242 = vld [vmem:[%s239 + $0x10] sm:$0xff]
    %v243 = vld [vmem:[%s239 + $0x18] sm:$0xff]
    %244 = vmatpush.msra.mxu0 0.0
    %245 = vmatpush.msra.mxu0 0.0
    %246 = vmatpush.msra.mxu0 0.0
    %247 = vmatpush.msra.mxu0 0.0
    %248 = vmatpush.msra.mxu0 0.0
    %249 = vmatpush.msra.mxu0 0.0
    %250 = vmatpush.msra.mxu0 0.0
    %251 = vmatpush.msra.mxu0 0.0
    %252 = vmatpush.msra.mxu0 0.0
    %253 = vmatpush.msra.mxu0 0.0
    %254 = vmatpush.msra.mxu0 0.0
    %255 = vmatpush.msra.mxu0 0.0
    %256 = vmatpush.msra.mxu0 %v243
    %257 = vmatpush.msra.mxu0 %v242
    %258 = vmatpush.msra.mxu0 %v241
    %259 = vmatpush.msra.mxu0 %v240
    %260 = vmatmul.f32.gmra.mxu0 %v128
    %v261 = vpop.f32.mrf.mxu0
    %v262 = vadd.f32 0.0, %v261
    %263 = vdwg.mxu0
    %264 = vmatpush.msra.mxu0 0.0
    %265 = vmatpush.msra.mxu0 0.0
    %266 = vmatpush.msra.mxu0 0.0
    %267 = vmatpush.msra.mxu0 0.0
    %268 = vmatpush.msra.mxu0 0.0
    %269 = vmatpush.msra.mxu0 0.0
    %270 = vmatpush.msra.mxu0 0.0
    %271 = vmatpush.msra.mxu0 0.0
    %272 = vmatpush.msra.mxu0 0.0
    %273 = vmatpush.msra.mxu0 0.0
    %274 = vmatpush.msra.mxu0 0.0
    %275 = vmatpush.msra.mxu0 0.0
    %276 = vmatpush.msra.mxu0 %v238
    %277 = vmatpush.msra.mxu0 %v237
    %278 = vmatpush.msra.mxu0 %v236
    %279 = vmatpush.msra.mxu0 %v235
    %280 = vmatmul.f32.gmra.mxu0 %v151
    %v281 = vpop.f32.mrf.mxu0
    %v282 = vadd.f32 %v262, %v281
    %283 = vdwg.mxu0
    %s284 = scalar_lea.vmem %s6, 2
    %v285 = vld [vmem:[%s284] sm:$0x1]
    %v287 = vperm.slane %v285, 0
    %v289 = vadd.f32 %v282, %v287
    %s290 = scalar_lea.vmem [#allocation10], 96
    %v291 = vld [vmem:[%s290] sm:$0xff]
    %v292 = vld [vmem:[%s290 + $0x8] sm:$0xff]
    %v293 = vld [vmem:[%s290 + $0x10] sm:$0xff]
    %v294 = vld [vmem:[%s290 + $0x18] sm:$0xff]
    %s295 = scalar_lea.vmem [#allocation11], 96
    %v296 = vld [vmem:[%s295] sm:$0xff]
    %v297 = vld [vmem:[%s295 + $0x8] sm:$0xff]
    %v298 = vld [vmem:[%s295 + $0x10] sm:$0xff]
    %v299 = vld [vmem:[%s295 + $0x18] sm:$0xff]
    %300 = vmatpush.msra.mxu0 0.0
    %301 = vmatpush.msra.mxu0 0.0
    %302 = vmatpush.msra.mxu0 0.0
    %303 = vmatpush.msra.mxu0 0.0
    %304 = vmatpush.msra.mxu0 0.0
    %305 = vmatpush.msra.mxu0 0.0
    %306 = vmatpush.msra.mxu0 0.0
    %307 = vmatpush.msra.mxu0 0.0
    %308 = vmatpush.msra.mxu0 0.0
    %309 = vmatpush.msra.mxu0 0.0
    %310 = vmatpush.msra.mxu0 0.0
    %311 = vmatpush.msra.mxu0 0.0
    %312 = vmatpush.msra.mxu0 %v299
    %313 = vmatpush.msra.mxu0 %v298
    %314 = vmatpush.msra.mxu0 %v297
    %315 = vmatpush.msra.mxu0 %v296
    %316 = vmatmul.f32.gmra.mxu0 %v128
    %v317 = vpop.f32.mrf.mxu0
    %v318 = vadd.f32 0.0, %v317
    %319 = vdwg.mxu0
    %320 = vmatpush.msra.mxu0 0.0
    %321 = vmatpush.msra.mxu0 0.0
    %322 = vmatpush.msra.mxu0 0.0
    %323 = vmatpush.msra.mxu0 0.0
    %324 = vmatpush.msra.mxu0 0.0
    %325 = vmatpush.msra.mxu0 0.0
    %326 = vmatpush.msra.mxu0 0.0
    %327 = vmatpush.msra.mxu0 0.0
    %328 = vmatpush.msra.mxu0 0.0
    %329 = vmatpush.msra.mxu0 0.0
    %330 = vmatpush.msra.mxu0 0.0
    %331 = vmatpush.msra.mxu0 0.0
    %332 = vmatpush.msra.mxu0 %v294
    %333 = vmatpush.msra.mxu0 %v293
    %334 = vmatpush.msra.mxu0 %v292
    %335 = vmatpush.msra.mxu0 %v291
    %336 = vmatmul.f32.gmra.mxu0 %v151
    %v337 = vpop.f32.mrf.mxu0
    %v338 = vadd.f32 %v318, %v337
    %339 = vdwg.mxu0
    %s340 = scalar_lea.vmem %s6, 3
    %v341 = vld [vmem:[%s340] sm:$0x1]
    %v343 = vperm.slane %v341, 0
    %v345 = vadd.f32 %v338, %v343
    %s346 = scalar_lea.vmem [#allocation10], 128
    %v347 = vld [vmem:[%s346] sm:$0xff]
    %v348 = vld [vmem:[%s346 + $0x8] sm:$0xff]
    %v349 = vld [vmem:[%s346 + $0x10] sm:$0xff]
    %v350 = vld [vmem:[%s346 + $0x18] sm:$0xff]
    %s351 = scalar_lea.vmem [#allocation11], 128
    %v352 = vld [vmem:[%s351] sm:$0xff]
    %v353 = vld [vmem:[%s351 + $0x8] sm:$0xff]
    %v354 = vld [vmem:[%s351 + $0x10] sm:$0xff]
    %v355 = vld [vmem:[%s351 + $0x18] sm:$0xff]
    %356 = vmatpush.msra.mxu0 0.0
    %357 = vmatpush.msra.mxu0 0.0
    %358 = vmatpush.msra.mxu0 0.0
    %359 = vmatpush.msra.mxu0 0.0
    %360 = vmatpush.msra.mxu0 0.0
    %361 = vmatpush.msra.mxu0 0.0
    %362 = vmatpush.msra.mxu0 0.0
    %363 = vmatpush.msra.mxu0 0.0
    %364 = vmatpush.msra.mxu0 0.0
    %365 = vmatpush.msra.mxu0 0.0
    %366 = vmatpush.msra.mxu0 0.0
    %367 = vmatpush.msra.mxu0 0.0
    %368 = vmatpush.msra.mxu0 %v355
    %369 = vmatpush.msra.mxu0 %v354
    %370 = vmatpush.msra.mxu0 %v353
    %371 = vmatpush.msra.mxu0 %v352
    %372 = vmatmul.f32.gmra.mxu0 %v128
    %v373 = vpop.f32.mrf.mxu0
    %v374 = vadd.f32 0.0, %v373
    %375 = vdwg.mxu0
    %376 = vmatpush.msra.mxu0 0.0
    %377 = vmatpush.msra.mxu0 0.0
    %378 = vmatpush.msra.mxu0 0.0
    %379 = vmatpush.msra.mxu0 0.0
    %380 = vmatpush.msra.mxu0 0.0
    %381 = vmatpush.msra.mxu0 0.0
    %382 = vmatpush.msra.mxu0 0.0
    %383 = vmatpush.msra.mxu0 0.0
    %384 = vmatpush.msra.mxu0 0.0
    %385 = vmatpush.msra.mxu0 0.0
    %386 = vmatpush.msra.mxu0 0.0
    %387 = vmatpush.msra.mxu0 0.0
    %388 = vmatpush.msra.mxu0 %v350
    %389 = vmatpush.msra.mxu0 %v349
    %390 = vmatpush.msra.mxu0 %v348
    %391 = vmatpush.msra.mxu0 %v347
    %392 = vmatmul.f32.gmra.mxu0 %v151
    %v393 = vpop.f32.mrf.mxu0
    %v394 = vadd.f32 %v374, %v393
    %395 = vdwg.mxu0
    %s396 = scalar_lea.vmem %s6, 4
    %v397 = vld [vmem:[%s396] sm:$0x1]
    %v399 = vperm.slane %v397, 0
    %v401 = vadd.f32 %v394, %v399
    %v402 = vmul.f32 %v177, 0.5
    %v403 = vtanh.pop %v402
    %v404 = vmul.f32 %v403, 0.5
    %v405 = vadd.f32 %v404, 0.5
    %v406 = vmul.f32 %v233, 0.5
    %v407 = vtanh.pop %v406
    %v408 = vmul.f32 %v407, 0.5
    %v409 = vadd.f32 %v408, 0.5
    %v410 = vmul.f32 %v289, 0.5
    %v411 = vtanh.pop %v410
    %v412 = vmul.f32 %v411, 0.5
    %v413 = vadd.f32 %v412, 0.5
    %v414 = vtanh.pop %v345
    %v415 = vmul.f32 %v401, 0.5
    %v416 = vtanh.pop %v415
    %v417 = vmul.f32 %v416, 0.5
    %v418 = vadd.f32 %v417, 0.5
    %v419 = vld [vmem:[#allocation7] sm:$0xff]
    %v420 = vld [vmem:[#allocation8] sm:$0xff]
    %v421 = vmul.f32 %v409, %v419
    %v422 = vmul.f32 %v413, %v420
    %v423 = vadd.f32 %v421, %v422
    %v424 = vmul.f32 %v405, %v414
    %v425 = vadd.f32 %v423, %v424
    %v426 = vtanh.pop %v425
    %v427 = vmul.f32 %v418, %v426
    %428 = vst.msk [vmem:[#allocation13] sm:$0xff] %vm126, %v427
    %429 = vst.msk [vmem:[#allocation14] sm:$0xff] %vm126, %v425
    // Predicated region
    $region54: #{tpu_custom_call.1} parent=1 // pred_check
      _
    $region55: #{tpu_custom_call.1} parent=1 // pred_check_branch
      %431 = sbr.rel (0) target = $region57
    $region56: #{tpu_custom_call.1} parent=1 // pred_region
      %433 = vsyncadd [#allocation4], 0
      %s435 = sshll.u32 [#allocation13], 4
      %s436 = int_to_ptr.vmem [resolvable:$true] %s435
      %s437 = sshll.u32 %s7, 4
      %s438 = int_to_ptr.hbm [resolvable:$true] %s437
      %440 = dma.vmem_to_hbm [thread:$0]  %s436, 128, %s438, [#allocation4]
    $region57: #{tpu_custom_call.1} parent=1 // pred_fallthru
      _
    // Predicated region
    $region58: #{tpu_custom_call.1} parent=1 // pred_check
      _
    $region59: #{tpu_custom_call.1} parent=1 // pred_check_branch
      %442 = sbr.rel (0) target = $region61
    $region60: #{tpu_custom_call.1} parent=1 // pred_region
      %444 = vsyncadd [#allocation15], 0
      %s446 = sshll.u32 [#allocation14], 4
      %s447 = int_to_ptr.vmem [resolvable:$true] %s446
      %s448 = sshll.u32 %s8, 4
      %s449 = int_to_ptr.hbm [resolvable:$true] %s448
      %451 = dma.vmem_to_hbm [thread:$0]  %s447, 128, %s449, [#allocation15]
    $region61: #{tpu_custom_call.1} parent=1 // pred_fallthru
      _
    // Predicated region
    $region62: #{tpu_custom_call.1} parent=1 // pred_check
      _
    $region63: #{tpu_custom_call.1} parent=1 // pred_check_branch
      %453 = sbr.rel (0) target = $region65
    $region64: #{tpu_custom_call.1} parent=1 // pred_region
      %455 = dma.done [#allocation4], 128
    $region65: #{tpu_custom_call.1} parent=1 // pred_fallthru
      _
    // Predicated region
    $region66: #{tpu_custom_call.1} parent=1 // pred_check
      _
    $region67: #{tpu_custom_call.1} parent=1 // pred_check_branch
      %457 = sbr.rel (0) target = $region69
    $region68: #{tpu_custom_call.1} parent=1 // pred_region
      %459 = dma.done [#allocation15], 128
    $region69: #{tpu_custom_call.1} parent=1 // pred_fallthru
      _
    %460 = vsyncpa [#allocation3], 1
    %461 = vsyncpa [#allocation6], 1
    %462 = vsyncpa [#allocation9], 1
    %463 = vsyncpa [#allocation12], 1
    %464 = vsyncpa [#allocation4], 1
    %465 = vsyncpa [#allocation15], 1

</llo_original>
